<compile_context>
chip_gen: v6e
topology: v6e:2x2x1
jax: 0.10.0
libtpu: 0.0.40
codegen_flags: <defaults>
</compile_context>

<pallas_src>
import math
import functools

import numpy as np
import jax
import jax.numpy as jnp
from jax.experimental import pallas as pl
from jax.experimental.pallas import tpu as pltpu

# ---------------------------------------------------------------------------
# Model configuration (small, deterministic)
# ---------------------------------------------------------------------------
B = 2          # batch
T = 2          # trajectory_num
S = 8          # sequence_length
E = 32         # n_embd
H = 4          # n_head
HS = E // H    # head_size
EPS = 1e-5     # LayerNorm eps (PyTorch default)

NEG_BIG = -1e30   # exp(x - max) underflows to exactly 0.0 in f32

# packed-consts row indices (rows of the single (8+Tk, 128) constants buffer)
_R_LN1G, _R_LN1B, _R_BQKV, _R_BOUT, _R_LN2G, _R_LN2B, _R_B1, _R_B2 = range(8)
_CONST_W = 128   # lane width of the packed constants buffer


# ---------------------------------------------------------------------------
# Pallas kernel: one block of `nb` (seq, n_embd) slabs per grid step.
# Tokens arrive pre-flattened as (Tk, E) with Tk = nb * S.
# ---------------------------------------------------------------------------
def _layernorm(z, g, b):
    mu = jnp.mean(z, axis=-1, keepdims=True)
    var = jnp.mean((z - mu) ** 2, axis=-1, keepdims=True)
    return (z - mu) * jax.lax.rsqrt(var + EPS) * g + b


def block_kernel(x_ref, wbig_ref, w1_ref, w2_ref, c_ref, o_ref, *, nb):
    Tk = nb * S
    x = x_ref[...]                                        # (Tk, E) f32

    # --- unpack the single constants buffer (static row/col slices, zero DMA cost) ---
    ln1g = c_ref[_R_LN1G:_R_LN1G + 1, 0:E]
    ln1b = c_ref[_R_LN1B:_R_LN1B + 1, 0:E]
    bqkv = c_ref[_R_BQKV:_R_BQKV + 1, 0:3 * E]
    bout = c_ref[_R_BOUT:_R_BOUT + 1, 0:E]
    ln2g = c_ref[_R_LN2G:_R_LN2G + 1, 0:E]
    ln2b = c_ref[_R_LN2B:_R_LN2B + 1, 0:E]
    b1 = c_ref[_R_B1:_R_B1 + 1, 0:2 * E]
    b2 = c_ref[_R_B2:_R_B2 + 1, 0:E]
    slab_bias = c_ref[8:8 + Tk, 0:Tk]                     # (Tk, Tk) additive mask

    w_all = wbig_ref[...]                                 # (E, 4E): [Wq*s | Wk | Wv | Wout]

    # ---- x + SA(LN1(x)) ----
    xn = _layernorm(x, ln1g, ln1b)

    # fused QKV projection; 1/sqrt(E) scale already folded into the Q columns/bias.
    qkv = jnp.dot(xn, w_all[:, 0:3 * E], preferred_element_type=jnp.float32) + bqkv
    q, k, v = qkv[:, 0:E], qkv[:, E:2 * E], qkv[:, 2 * E:3 * E]

    head_outs = []
    for h in range(H):                                    # static loop over heads
        lo = h * HS
        qh, kh, vh = q[:, lo:lo + HS], k[:, lo:lo + HS], v[:, lo:lo + HS]
        s = jax.lax.dot_general(qh, kh, (((1,), (1,)), ((), ())),
                                preferred_element_type=jnp.float32)
        s = s + slab_bias                                 # single VPU add (mask)
        m = jnp.max(s, axis=-1, keepdims=True)
        e = jnp.exp(s - m)
        denom = jnp.sum(e, axis=-1, keepdims=True)
        p = e * pl.reciprocal(denom, approx=False)        # EUP reciprocal + multiply
        head_outs.append(jnp.dot(p, vh, preferred_element_type=jnp.float32))
    attn = jnp.concatenate(head_outs, axis=-1)            # (Tk, E)

    # folded (out_proj ∘ proj):  sa = attn @ (Wo_bd @ Wp) + (bo @ Wp + bp)
    sa = jnp.dot(attn, w_all[:, 3 * E:4 * E], preferred_element_type=jnp.float32) + bout
    x1 = x + sa

    # ---- x + FFWD(LN2(x)) ----
    xn2 = _layernorm(x1, ln2g, ln2b)
    h1 = jnp.dot(xn2, w1_ref[...], preferred_element_type=jnp.float32) + b1
    h1 = h1 * jax.nn.sigmoid(h1)                          # SiLU
    h2 = jnp.dot(h1, w2_ref[...], preferred_element_type=jnp.float32) + b2

    o_ref[...] = x1 + h2


# ---------------------------------------------------------------------------
# Wrapper: trace-time weight folding/packing + pallas_call
# ---------------------------------------------------------------------------
@functools.partial(jax.jit, static_argnames=("bt_per_step",))
def block_forward(x, params, *, bt_per_step=None):
    """x: (B, T, S, E) f32 -> (B, T, S, E) f32."""
    BT = B * T
    nb = BT if bt_per_step is None else bt_per_step       # one maximal grid step
    assert BT % nb == 0
    Tk = nb * S
    assert Tk <= 128 and 3 * E <= _CONST_W and 2 * E <= _CONST_W

    xf = x.reshape(BT * S, E)                             # tokens flattened: (BT*S, E)

    HIGH = jax.lax.Precision.HIGHEST
    scale = 1.0 / math.sqrt(E)                            # reference scales by sqrt(n_embd)

    # ---- trace-time weight folding (plain JAX, outside the kernel) ----
    w_qkv = jnp.concatenate([params["wq"] * scale, params["wk"], params["wv"]], axis=1)
    b_qkv = jnp.concatenate([params["bq"] * scale, params["bk"], params["bv"]], axis=1)
    w_out = jnp.dot(params["wo_bd"], params["wp"], precision=HIGH)            # (E, E)
    b_out = jnp.dot(params["bo"], params["wp"], precision=HIGH) + params["bp"]  # (1, E)
    w_big = jnp.concatenate([w_qkv, w_out], axis=1)       # (E, 4E) == (32, 128)

    # ---- single packed constants buffer: 8 bias rows + additive slab mask ----
    def _row(v):
        return jnp.pad(v, ((0, 0), (0, _CONST_W - v.shape[1])))

    bias_rows = jnp.concatenate([
        _row(params["ln1_g"]), _row(params["ln1_b"]),
        _row(b_qkv), _row(b_out),
        _row(params["ln2_g"]), _row(params["ln2_b"]),
        _row(params["b1"]), _row(params["b2"]),
    ], axis=0)                                            # (8, 128)

    rs = np.arange(Tk)[:, None] // S
    cs = np.arange(Tk)[None, :] // S
    slab_np = np.where(rs == cs, 0.0, NEG_BIG).astype(np.float32)
    slab_pad = np.zeros((Tk, _CONST_W), np.float32)
    slab_pad[:, :Tk] = slab_np
    consts = jnp.concatenate([bias_rows, jnp.asarray(slab_pad)], axis=0)  # (8+Tk, 128)

    kernel = functools.partial(block_kernel, nb=nb)
    out = pl.pallas_call(
        kernel,
        out_shape=jax.ShapeDtypeStruct((BT * S, E), jnp.float32),
        grid=(BT // nb,),
        in_specs=[
            pl.BlockSpec((Tk, E), lambda i: (i, 0)),                  # activations
            pl.BlockSpec((E, 4 * E), lambda i: (0, 0)),               # Wqkv | Wout
            pl.BlockSpec((E, 2 * E), lambda i: (0, 0)),               # ffwd W1
            pl.BlockSpec((2 * E, E), lambda i: (0, 0)),               # ffwd W2
            pl.BlockSpec((8 + Tk, _CONST_W), lambda i: (0, 0)),       # packed consts
        ],
        out_specs=pl.BlockSpec((Tk, E), lambda i: (i, 0)),
        compiler_params=pltpu.CompilerParams(
            dimension_semantics=("parallel",)),
    )(xf, w_big, params["w1"], params["w2"], consts)
    return out.reshape(B, T, S, E)


# ---------------------------------------------------------------------------
# Deterministic parameter construction (shapes from the module's __init__)
# ---------------------------------------------------------------------------
def make_params(key):
    ks = jax.random.split(key, 40)
    it = iter(ks)

    def lin(kw, kb, fan_in, fan_out):
        lim = 1.0 / math.sqrt(fan_in)
        w = jax.random.uniform(kw, (fan_in, fan_out), jnp.float32, -lim, lim)
        b = jax.random.uniform(kb, (1, fan_out), jnp.float32, -lim, lim)
        return w, b

    # per-head q/k/v projections (n_embd -> head_size), concatenated along columns
    wq_h, bq_h, wk_h, bk_h, wv_h, bv_h, wo_h, bo_h = [], [], [], [], [], [], [], []
    for _ in range(H):
        w, b = lin(next(it), next(it), E, HS); wq_h.append(w); bq_h.append(b)
    for _ in range(H):
        w, b = lin(next(it), next(it), E, HS); wk_h.append(w); bk_h.append(b)
    for _ in range(H):
        w, b = lin(next(it), next(it), E, HS); wv_h.append(w); bv_h.append(b)
    for _ in range(H):
        w, b = lin(next(it), next(it), HS, HS); wo_h.append(w); bo_h.append(b)

    # block-diagonal packing of the per-head out_proj (hs->hs each)
    wo_bd = jnp.zeros((E, E), jnp.float32)
    for h in range(H):
        wo_bd = wo_bd.at[h * HS:(h + 1) * HS, h * HS:(h + 1) * HS].set(wo_h[h])

    kw, kb = jax.random.split(next(it))
    wp, bp = lin(kw, kb, E, E)
    kw, kb = jax.random.split(next(it))
    w1, b1 = lin(kw, kb, E, 2 * E)
    kw, kb = jax.random.split(next(it))
    w2, b2 = lin(kw, kb, 2 * E, E)

    params = dict(
        ln1_g=jnp.ones((1, E), jnp.float32), ln1_b=jnp.zeros((1, E), jnp.float32),
        ln2_g=jnp.ones((1, E), jnp.float32), ln2_b=jnp.zeros((1, E), jnp.float32),
        wq=jnp.concatenate(wq_h, axis=1), bq=jnp.concatenate(bq_h, axis=1),
        wk=jnp.concatenate(wk_h, axis=1), bk=jnp.concatenate(bk_h, axis=1),
        wv=jnp.concatenate(wv_h, axis=1), bv=jnp.concatenate(bv_h, axis=1),
        wo_bd=wo_bd, bo=jnp.concatenate(bo_h, axis=1),
        wp=wp, bp=bp, w1=w1, b1=b1, w2=w2, b2=b2,
    )
    per_head = dict(wq_h=wq_h, bq_h=bq_h, wk_h=wk_h, bk_h=bk_h,
                    wv_h=wv_h, bv_h=bv_h, wo_h=wo_h, bo_h=bo_h)
    return params, per_head


# ---------------------------------------------------------------------------
# Pure-JAX reference (mirrors the PyTorch forward, eval mode, no mask)
# ---------------------------------------------------------------------------
def reference_forward(x, params, per_head):
    HIGH = jax.lax.Precision.HIGHEST

    def mm(a, b):
        return jnp.matmul(a, b, precision=HIGH)

    def ln(z, g, b):
        mu = z.mean(-1, keepdims=True)
        var = ((z - mu) ** 2).mean(-1, keepdims=True)
        return (z - mu) / jnp.sqrt(var + EPS) * g[0] + b[0]

    xn = ln(x, params["ln1_g"], params["ln1_b"])
    outs = []
    for h in range(H):
        q = mm(xn, per_head["wq_h"][h]) + per_head["bq_h"][h][0]
        k = mm(xn, per_head["wk_h"][h]) + per_head["bk_h"][h][0]
        v = mm(xn, per_head["wv_h"][h]) + per_head["bv_h"][h][0]
        w = mm(q, jnp.swapaxes(k, -1, -2)) / math.sqrt(E)   # reference uses n_embd here
        w = jax.nn.softmax(w, axis=-1)
        o = mm(w, v)
        o = mm(o, per_head["wo_h"][h]) + per_head["bo_h"][h][0]
        outs.append(o)
    sa = jnp.concatenate(outs, axis=-1)
    sa = mm(sa, params["wp"]) + params["bp"][0]
    x1 = x + sa

    xn2 = ln(x1, params["ln2_g"], params["ln2_b"])
    h1 = mm(xn2, params["w1"]) + params["b1"][0]
    h1 = h1 * jax.nn.sigmoid(h1)
    h2 = mm(h1, params["w2"]) + params["b2"][0]
    return x1 + h2


# ---------------------------------------------------------------------------
if __name__ == "__main__":
    key = jax.random.PRNGKey(0)
    kx, kp = jax.random.split(key)
    x = jax.random.normal(kx, (B, T, S, E), jnp.float32)

    params, per_head = make_params(kp)

    out = block_forward(x, params)          # single maximal grid step (grid=(1,))
    out = jax.block_until_ready(out)

    ref = reference_forward(x, params, per_head)
    assert out.shape == (B, T, S, E)
    assert jnp.allclose(out, ref, rtol=1e-4, atol=1e-4), "mismatch vs reference"

    print("KERNEL_OK")
</pallas_src>

<mosaic_0001>
module attributes {stable_mosaic.version = 11 : i64} {
  func.func @block_kernel(%arg0: i32, %arg1: memref<32x32xf32, #tpu.memory_space<vmem>>, %arg2: memref<32x128xf32, #tpu.memory_space<vmem>>, %arg3: memref<32x64xf32, #tpu.memory_space<vmem>>, %arg4: memref<64x32xf32, #tpu.memory_space<vmem>>, %arg5: memref<40x128xf32, #tpu.memory_space<vmem>>, %arg6: memref<32x32xf32, #tpu.memory_space<vmem>>) attributes {dimension_semantics = [#tpu.dimension_semantics<parallel>], iteration_bounds = array<i64: 1>, scalar_prefetch = 0 : i64, scratch_operands = 0 : i64, tpu.core_type = #tpu.core_type<tc>, window_params = [{transform_indices = @transform_0, window_bounds = array<i64: 32, 32>}, {pipeline_mode = #tpu.pipeline_mode<synchronous>, transform_indices = @transform_1, window_bounds = array<i64: 32, 128>}, {pipeline_mode = #tpu.pipeline_mode<synchronous>, transform_indices = @transform_2, window_bounds = array<i64: 32, 64>}, {pipeline_mode = #tpu.pipeline_mode<synchronous>, transform_indices = @transform_3, window_bounds = array<i64: 64, 32>}, {pipeline_mode = #tpu.pipeline_mode<synchronous>, transform_indices = @transform_4, window_bounds = array<i64: 40, 128>}, {transform_indices = @transform_5, window_bounds = array<i64: 32, 32>}]} {
    %c0 = arith.constant 0 : index
    %c0_0 = arith.constant 0 : index
    %0 = vector.load %arg1[%c0, %c0_0] : memref<32x32xf32, #tpu.memory_space<vmem>>, vector<32x32xf32>
    %c0_1 = arith.constant 0 : index
    %c0_2 = arith.constant 0 : index
    %1 = vector.load %arg5[%c0_1, %c0_2] : memref<40x128xf32, #tpu.memory_space<vmem>>, vector<1x32xf32>
    %c1 = arith.constant 1 : index
    %c0_3 = arith.constant 0 : index
    %2 = vector.load %arg5[%c1, %c0_3] : memref<40x128xf32, #tpu.memory_space<vmem>>, vector<1x32xf32>
    %c2 = arith.constant 2 : index
    %c0_4 = arith.constant 0 : index
    %3 = vector.load %arg5[%c2, %c0_4] : memref<40x128xf32, #tpu.memory_space<vmem>>, vector<1x96xf32>
    %c3 = arith.constant 3 : index
    %c0_5 = arith.constant 0 : index
    %4 = vector.load %arg5[%c3, %c0_5] : memref<40x128xf32, #tpu.memory_space<vmem>>, vector<1x32xf32>
    %c4 = arith.constant 4 : index
    %c0_6 = arith.constant 0 : index
    %5 = vector.load %arg5[%c4, %c0_6] : memref<40x128xf32, #tpu.memory_space<vmem>>, vector<1x32xf32>
    %c5 = arith.constant 5 : index
    %c0_7 = arith.constant 0 : index
    %6 = vector.load %arg5[%c5, %c0_7] : memref<40x128xf32, #tpu.memory_space<vmem>>, vector<1x32xf32>
    %c6 = arith.constant 6 : index
    %c0_8 = arith.constant 0 : index
    %7 = vector.load %arg5[%c6, %c0_8] : memref<40x128xf32, #tpu.memory_space<vmem>>, vector<1x64xf32>
    %c7 = arith.constant 7 : index
    %c0_9 = arith.constant 0 : index
    %8 = vector.load %arg5[%c7, %c0_9] : memref<40x128xf32, #tpu.memory_space<vmem>>, vector<1x32xf32>
    %c8 = arith.constant 8 : index
    %c0_10 = arith.constant 0 : index
    %9 = vector.load %arg5[%c8, %c0_10] : memref<40x128xf32, #tpu.memory_space<vmem>>, vector<32x32xf32>
    %c0_11 = arith.constant 0 : index
    %c0_12 = arith.constant 0 : index
    %10 = vector.load %arg2[%c0_11, %c0_12] : memref<32x128xf32, #tpu.memory_space<vmem>>, vector<32x128xf32>
    %cst = arith.constant dense<0.000000e+00> : vector<32xf32>
    %11 = vector.multi_reduction <add>, %0, %cst [1] : vector<32x32xf32> to vector<32xf32>
    %12 = vector.shape_cast %11 : vector<32xf32> to vector<32x1xf32>
    %cst_13 = arith.constant 3.200000e+01 : f32
    %13 = vector.broadcast %cst_13 : f32 to vector<32x1xf32>
    %14 = arith.divf %12, %13 : vector<32x1xf32>
    %15 = vector.broadcast %14 : vector<32x1xf32> to vector<32x32xf32>
    %16 = arith.subf %0, %15 : vector<32x32xf32>
    %17 = arith.mulf %16, %16 : vector<32x32xf32>
    %cst_14 = arith.constant dense<0.000000e+00> : vector<32xf32>
    %18 = vector.multi_reduction <add>, %17, %cst_14 [1] : vector<32x32xf32> to vector<32xf32>
    %19 = vector.shape_cast %18 : vector<32xf32> to vector<32x1xf32>
    %cst_15 = arith.constant 3.200000e+01 : f32
    %20 = vector.broadcast %cst_15 : f32 to vector<32x1xf32>
    %21 = arith.divf %19, %20 : vector<32x1xf32>
    %22 = vector.broadcast %14 : vector<32x1xf32> to vector<32x32xf32>
    %23 = arith.subf %0, %22 : vector<32x32xf32>
    %cst_16 = arith.constant 9.99999974E-6 : f32
    %24 = vector.broadcast %cst_16 : f32 to vector<32x1xf32>
    %25 = arith.addf %21, %24 : vector<32x1xf32>
    %26 = math.rsqrt %25 : vector<32x1xf32>
    %27 = vector.broadcast %26 : vector<32x1xf32> to vector<32x32xf32>
    %28 = arith.mulf %23, %27 : vector<32x32xf32>
    %29 = vector.broadcast %1 : vector<1x32xf32> to vector<32x32xf32>
    %30 = arith.mulf %28, %29 : vector<32x32xf32>
    %31 = vector.broadcast %2 : vector<1x32xf32> to vector<32x32xf32>
    %32 = arith.addf %30, %31 : vector<32x32xf32>
    %33 = vector.extract_strided_slice %10 {offsets = [0, 0], sizes = [32, 96], strides = [1, 1]} : vector<32x128xf32> to vector<32x96xf32>
    %cst_17 = arith.constant dense<0.000000e+00> : vector<32x96xf32>
    %34 = tpu.matmul %32, %33, %cst_17 {dimension_numbers = #tpu.dot_dimension_numbers<[1], [0], [0], [1], [0, 0, 1, 1], [], []>} : vector<32x32xf32>, vector<32x96xf32>, vector<32x96xf32> -> vector<32x96xf32>
    %35 = vector.broadcast %3 : vector<1x96xf32> to vector<32x96xf32>
    %36 = arith.addf %34, %35 : vector<32x96xf32>
    %37 = vector.extract_strided_slice %36 {offsets = [0, 0], sizes = [32, 32], strides = [1, 1]} : vector<32x96xf32> to vector<32x32xf32>
    %38 = vector.extract_strided_slice %36 {offsets = [0, 32], sizes = [32, 32], strides = [1, 1]} : vector<32x96xf32> to vector<32x32xf32>
    %39 = vector.extract_strided_slice %36 {offsets = [0, 64], sizes = [32, 32], strides = [1, 1]} : vector<32x96xf32> to vector<32x32xf32>
    %40 = vector.extract_strided_slice %37 {offsets = [0, 0], sizes = [32, 8], strides = [1, 1]} : vector<32x32xf32> to vector<32x8xf32>
    %41 = vector.extract_strided_slice %38 {offsets = [0, 0], sizes = [32, 8], strides = [1, 1]} : vector<32x32xf32> to vector<32x8xf32>
    %42 = vector.extract_strided_slice %39 {offsets = [0, 0], sizes = [32, 8], strides = [1, 1]} : vector<32x32xf32> to vector<32x8xf32>
    %cst_18 = arith.constant dense<0.000000e+00> : vector<32x32xf32>
    %43 = tpu.matmul %40, %41, %cst_18 {dimension_numbers = #tpu.dot_dimension_numbers<[1], [1], [0], [0], [0, 0, 1, 0], [], []>} : vector<32x8xf32>, vector<32x8xf32>, vector<32x32xf32> -> vector<32x32xf32>
    %44 = arith.addf %43, %9 : vector<32x32xf32>
    %cst_19 = arith.constant dense<0xFF800000> : vector<32xf32>
    %45 = vector.multi_reduction <maximumf>, %44, %cst_19 [1] : vector<32x32xf32> to vector<32xf32>
    %46 = vector.shape_cast %45 : vector<32xf32> to vector<32x1xf32>
    %47 = vector.broadcast %46 : vector<32x1xf32> to vector<32x32xf32>
    %48 = arith.subf %44, %47 : vector<32x32xf32>
    %49 = math.exp %48 : vector<32x32xf32>
    %cst_20 = arith.constant dense<0.000000e+00> : vector<32xf32>
    %50 = vector.multi_reduction <add>, %49, %cst_20 [1] : vector<32x32xf32> to vector<32xf32>
    %51 = vector.shape_cast %50 : vector<32xf32> to vector<32x1xf32>
    %52 = tpu.reciprocal %51 : vector<32x1xf32> -> vector<32x1xf32>
    %53 = vector.broadcast %52 : vector<32x1xf32> to vector<32x32xf32>
    %54 = arith.mulf %49, %53 : vector<32x32xf32>
    %cst_21 = arith.constant dense<0.000000e+00> : vector<32x8xf32>
    %55 = tpu.matmul %54, %42, %cst_21 {dimension_numbers = #tpu.dot_dimension_numbers<[1], [0], [0], [1], [0, 0, 1, 1], [], []>} : vector<32x32xf32>, vector<32x8xf32>, vector<32x8xf32> -> vector<32x8xf32>
    %56 = vector.extract_strided_slice %37 {offsets = [0, 8], sizes = [32, 8], strides = [1, 1]} : vector<32x32xf32> to vector<32x8xf32>
    %57 = vector.extract_strided_slice %38 {offsets = [0, 8], sizes = [32, 8], strides = [1, 1]} : vector<32x32xf32> to vector<32x8xf32>
    %58 = vector.extract_strided_slice %39 {offsets = [0, 8], sizes = [32, 8], strides = [1, 1]} : vector<32x32xf32> to vector<32x8xf32>
    %cst_22 = arith.constant dense<0.000000e+00> : vector<32x32xf32>
    %59 = tpu.matmul %56, %57, %cst_22 {dimension_numbers = #tpu.dot_dimension_numbers<[1], [1], [0], [0], [0, 0, 1, 0], [], []>} : vector<32x8xf32>, vector<32x8xf32>, vector<32x32xf32> -> vector<32x32xf32>
    %60 = arith.addf %59, %9 : vector<32x32xf32>
    %cst_23 = arith.constant dense<0xFF800000> : vector<32xf32>
    %61 = vector.multi_reduction <maximumf>, %60, %cst_23 [1] : vector<32x32xf32> to vector<32xf32>
    %62 = vector.shape_cast %61 : vector<32xf32> to vector<32x1xf32>
    %63 = vector.broadcast %62 : vector<32x1xf32> to vector<32x32xf32>
    %64 = arith.subf %60, %63 : vector<32x32xf32>
    %65 = math.exp %64 : vector<32x32xf32>
    %cst_24 = arith.constant dense<0.000000e+00> : vector<32xf32>
    %66 = vector.multi_reduction <add>, %65, %cst_24 [1] : vector<32x32xf32> to vector<32xf32>
    %67 = vector.shape_cast %66 : vector<32xf32> to vector<32x1xf32>
    %68 = tpu.reciprocal %67 : vector<32x1xf32> -> vector<32x1xf32>
    %69 = vector.broadcast %68 : vector<32x1xf32> to vector<32x32xf32>
    %70 = arith.mulf %65, %69 : vector<32x32xf32>
    %cst_25 = arith.constant dense<0.000000e+00> : vector<32x8xf32>
    %71 = tpu.matmul %70, %58, %cst_25 {dimension_numbers = #tpu.dot_dimension_numbers<[1], [0], [0], [1], [0, 0, 1, 1], [], []>} : vector<32x32xf32>, vector<32x8xf32>, vector<32x8xf32> -> vector<32x8xf32>
    %72 = vector.extract_strided_slice %37 {offsets = [0, 16], sizes = [32, 8], strides = [1, 1]} : vector<32x32xf32> to vector<32x8xf32>
    %73 = vector.extract_strided_slice %38 {offsets = [0, 16], sizes = [32, 8], strides = [1, 1]} : vector<32x32xf32> to vector<32x8xf32>
    %74 = vector.extract_strided_slice %39 {offsets = [0, 16], sizes = [32, 8], strides = [1, 1]} : vector<32x32xf32> to vector<32x8xf32>
    %cst_26 = arith.constant dense<0.000000e+00> : vector<32x32xf32>
    %75 = tpu.matmul %72, %73, %cst_26 {dimension_numbers = #tpu.dot_dimension_numbers<[1], [1], [0], [0], [0, 0, 1, 0], [], []>} : vector<32x8xf32>, vector<32x8xf32>, vector<32x32xf32> -> vector<32x32xf32>
    %76 = arith.addf %75, %9 : vector<32x32xf32>
    %cst_27 = arith.constant dense<0xFF800000> : vector<32xf32>
    %77 = vector.multi_reduction <maximumf>, %76, %cst_27 [1] : vector<32x32xf32> to vector<32xf32>
    %78 = vector.shape_cast %77 : vector<32xf32> to vector<32x1xf32>
    %79 = vector.broadcast %78 : vector<32x1xf32> to vector<32x32xf32>
    %80 = arith.subf %76, %79 : vector<32x32xf32>
    %81 = math.exp %80 : vector<32x32xf32>
    %cst_28 = arith.constant dense<0.000000e+00> : vector<32xf32>
    %82 = vector.multi_reduction <add>, %81, %cst_28 [1] : vector<32x32xf32> to vector<32xf32>
    %83 = vector.shape_cast %82 : vector<32xf32> to vector<32x1xf32>
    %84 = tpu.reciprocal %83 : vector<32x1xf32> -> vector<32x1xf32>
    %85 = vector.broadcast %84 : vector<32x1xf32> to vector<32x32xf32>
    %86 = arith.mulf %81, %85 : vector<32x32xf32>
    %cst_29 = arith.constant dense<0.000000e+00> : vector<32x8xf32>
    %87 = tpu.matmul %86, %74, %cst_29 {dimension_numbers = #tpu.dot_dimension_numbers<[1], [0], [0], [1], [0, 0, 1, 1], [], []>} : vector<32x32xf32>, vector<32x8xf32>, vector<32x8xf32> -> vector<32x8xf32>
    %88 = vector.extract_strided_slice %37 {offsets = [0, 24], sizes = [32, 8], strides = [1, 1]} : vector<32x32xf32> to vector<32x8xf32>
    %89 = vector.extract_strided_slice %38 {offsets = [0, 24], sizes = [32, 8], strides = [1, 1]} : vector<32x32xf32> to vector<32x8xf32>
    %90 = vector.extract_strided_slice %39 {offsets = [0, 24], sizes = [32, 8], strides = [1, 1]} : vector<32x32xf32> to vector<32x8xf32>
    %cst_30 = arith.constant dense<0.000000e+00> : vector<32x32xf32>
    %91 = tpu.matmul %88, %89, %cst_30 {dimension_numbers = #tpu.dot_dimension_numbers<[1], [1], [0], [0], [0, 0, 1, 0], [], []>} : vector<32x8xf32>, vector<32x8xf32>, vector<32x32xf32> -> vector<32x32xf32>
    %92 = arith.addf %91, %9 : vector<32x32xf32>
    %cst_31 = arith.constant dense<0xFF800000> : vector<32xf32>
    %93 = vector.multi_reduction <maximumf>, %92, %cst_31 [1] : vector<32x32xf32> to vector<32xf32>
    %94 = vector.shape_cast %93 : vector<32xf32> to vector<32x1xf32>
    %95 = vector.broadcast %94 : vector<32x1xf32> to vector<32x32xf32>
    %96 = arith.subf %92, %95 : vector<32x32xf32>
    %97 = math.exp %96 : vector<32x32xf32>
    %cst_32 = arith.constant dense<0.000000e+00> : vector<32xf32>
    %98 = vector.multi_reduction <add>, %97, %cst_32 [1] : vector<32x32xf32> to vector<32xf32>
    %99 = vector.shape_cast %98 : vector<32xf32> to vector<32x1xf32>
    %100 = tpu.reciprocal %99 : vector<32x1xf32> -> vector<32x1xf32>
    %101 = vector.broadcast %100 : vector<32x1xf32> to vector<32x32xf32>
    %102 = arith.mulf %97, %101 : vector<32x32xf32>
    %cst_33 = arith.constant dense<0.000000e+00> : vector<32x8xf32>
    %103 = tpu.matmul %102, %90, %cst_33 {dimension_numbers = #tpu.dot_dimension_numbers<[1], [0], [0], [1], [0, 0, 1, 1], [], []>} : vector<32x32xf32>, vector<32x8xf32>, vector<32x8xf32> -> vector<32x8xf32>
    %104 = tpu.concatenate %55, %71, %87, %103 in 1 : vector<32x8xf32>, vector<32x8xf32>, vector<32x8xf32>, vector<32x8xf32> -> vector<32x32xf32>
    %105 = vector.extract_strided_slice %10 {offsets = [0, 96], sizes = [32, 32], strides = [1, 1]} : vector<32x128xf32> to vector<32x32xf32>
    %cst_34 = arith.constant dense<0.000000e+00> : vector<32x32xf32>
    %106 = tpu.matmul %104, %105, %cst_34 {dimension_numbers = #tpu.dot_dimension_numbers<[1], [0], [0], [1], [0, 0, 1, 1], [], []>} : vector<32x32xf32>, vector<32x32xf32>, vector<32x32xf32> -> vector<32x32xf32>
    %107 = vector.broadcast %4 : vector<1x32xf32> to vector<32x32xf32>
    %108 = arith.addf %106, %107 : vector<32x32xf32>
    %109 = arith.addf %0, %108 : vector<32x32xf32>
    %cst_35 = arith.constant dense<0.000000e+00> : vector<32xf32>
    %110 = vector.multi_reduction <add>, %109, %cst_35 [1] : vector<32x32xf32> to vector<32xf32>
    %111 = vector.shape_cast %110 : vector<32xf32> to vector<32x1xf32>
    %cst_36 = arith.constant 3.200000e+01 : f32
    %112 = vector.broadcast %cst_36 : f32 to vector<32x1xf32>
    %113 = arith.divf %111, %112 : vector<32x1xf32>
    %114 = vector.broadcast %113 : vector<32x1xf32> to vector<32x32xf32>
    %115 = arith.subf %109, %114 : vector<32x32xf32>
    %116 = arith.mulf %115, %115 : vector<32x32xf32>
    %cst_37 = arith.constant dense<0.000000e+00> : vector<32xf32>
    %117 = vector.multi_reduction <add>, %116, %cst_37 [1] : vector<32x32xf32> to vector<32xf32>
    %118 = vector.shape_cast %117 : vector<32xf32> to vector<32x1xf32>
    %cst_38 = arith.constant 3.200000e+01 : f32
    %119 = vector.broadcast %cst_38 : f32 to vector<32x1xf32>
    %120 = arith.divf %118, %119 : vector<32x1xf32>
    %121 = vector.broadcast %113 : vector<32x1xf32> to vector<32x32xf32>
    %122 = arith.subf %109, %121 : vector<32x32xf32>
    %cst_39 = arith.constant 9.99999974E-6 : f32
    %123 = vector.broadcast %cst_39 : f32 to vector<32x1xf32>
    %124 = arith.addf %120, %123 : vector<32x1xf32>
    %125 = math.rsqrt %124 : vector<32x1xf32>
    %126 = vector.broadcast %125 : vector<32x1xf32> to vector<32x32xf32>
    %127 = arith.mulf %122, %126 : vector<32x32xf32>
    %128 = vector.broadcast %5 : vector<1x32xf32> to vector<32x32xf32>
    %129 = arith.mulf %127, %128 : vector<32x32xf32>
    %130 = vector.broadcast %6 : vector<1x32xf32> to vector<32x32xf32>
    %131 = arith.addf %129, %130 : vector<32x32xf32>
    %c0_40 = arith.constant 0 : index
    %c0_41 = arith.constant 0 : index
    %132 = vector.load %arg3[%c0_40, %c0_41] : memref<32x64xf32, #tpu.memory_space<vmem>>, vector<32x64xf32>
    %cst_42 = arith.constant dense<0.000000e+00> : vector<32x64xf32>
    %133 = tpu.matmul %131, %132, %cst_42 {dimension_numbers = #tpu.dot_dimension_numbers<[1], [0], [0], [1], [0, 0, 1, 1], [], []>} : vector<32x32xf32>, vector<32x64xf32>, vector<32x64xf32> -> vector<32x64xf32>
    %134 = vector.broadcast %7 : vector<1x64xf32> to vector<32x64xf32>
    %135 = arith.addf %133, %134 : vector<32x64xf32>
    %136 = arith.negf %135 : vector<32x64xf32>
    %137 = math.exp %136 : vector<32x64xf32>
    %cst_43 = arith.constant 1.000000e+00 : f32
    %138 = vector.broadcast %cst_43 : f32 to vector<32x64xf32>
    %139 = arith.addf %138, %137 : vector<32x64xf32>
    %140 = arith.divf %138, %139 : vector<32x64xf32>
    %141 = arith.mulf %135, %140 : vector<32x64xf32>
    %c0_44 = arith.constant 0 : index
    %c0_45 = arith.constant 0 : index
    %142 = vector.load %arg4[%c0_44, %c0_45] : memref<64x32xf32, #tpu.memory_space<vmem>>, vector<64x32xf32>
    %cst_46 = arith.constant dense<0.000000e+00> : vector<32x32xf32>
    %143 = tpu.matmul %141, %142, %cst_46 {dimension_numbers = #tpu.dot_dimension_numbers<[1], [0], [0], [1], [0, 0, 1, 1], [], []>} : vector<32x64xf32>, vector<64x32xf32>, vector<32x32xf32> -> vector<32x32xf32>
    %144 = vector.broadcast %8 : vector<1x32xf32> to vector<32x32xf32>
    %145 = arith.addf %143, %144 : vector<32x32xf32>
    %146 = arith.addf %109, %145 : vector<32x32xf32>
    %c0_47 = arith.constant 0 : index
    %c0_48 = arith.constant 0 : index
    %147 = vector.load %arg6[%c0_47, %c0_48] : memref<32x32xf32, #tpu.memory_space<vmem>>, vector<32x32xf32>
    tpu.vector_store %arg6[%c0_47, %c0_48], %146 {strides = array<i32>} : memref<32x32xf32, #tpu.memory_space<vmem>>, vector<32x32xf32>,
    return
  }
  func.func @transform_0(%arg0: i32) -> (i32, i32) {
    %c0_i32 = arith.constant 0 : i32
    %c0_i32_0 = arith.constant 0 : i32
    return %arg0, %c0_i32 : i32, i32
  }
  func.func @transform_1(%arg0: i32) -> (i32, i32) {
    %c0_i32 = arith.constant 0 : i32
    %c0_i32_0 = arith.constant 0 : i32
    %c0_i32_1 = arith.constant 0 : i32
    return %c0_i32, %c0_i32_0 : i32, i32
  }
  func.func @transform_2(%arg0: i32) -> (i32, i32) {
    %c0_i32 = arith.constant 0 : i32
    %c0_i32_0 = arith.constant 0 : i32
    %c0_i32_1 = arith.constant 0 : i32
    return %c0_i32, %c0_i32_0 : i32, i32
  }
  func.func @transform_3(%arg0: i32) -> (i32, i32) {
    %c0_i32 = arith.constant 0 : i32
    %c0_i32_0 = arith.constant 0 : i32
    %c0_i32_1 = arith.constant 0 : i32
    return %c0_i32, %c0_i32_0 : i32, i32
  }
  func.func @transform_4(%arg0: i32) -> (i32, i32) {
    %c0_i32 = arith.constant 0 : i32
    %c0_i32_0 = arith.constant 0 : i32
    %c0_i32_1 = arith.constant 0 : i32
    return %c0_i32, %c0_i32_0 : i32, i32
  }
  func.func @transform_5(%arg0: i32) -> (i32, i32) {
    %c0_i32 = arith.constant 0 : i32
    %c0_i32_0 = arith.constant 0 : i32
    return %arg0, %c0_i32 : i32, i32
  }
}

</mosaic_0001>

<llo_original>
// kernel: block_forward.1
$region0: #{block_forward.1}
  #allocation0 [shape = 'u32[]', space=smem, size = 0x4, offset = 0x4, fixed_abs, tag = 'smem constant byte address 0x4 - core index']
  #allocation1 [shape = 'u32[144,128]{1,0:T(1,128)}', space=vmem, size = 0x12000, scoped, tag = 'internal scratch']
  %s0 = inlined_call_operand.vmem [shape: f32[32,32], index: 0, kind: input, shape index: {}]
  %s1 = inlined_call_operand.vmem [shape: f32[32,128], index: 1, kind: input, shape index: {}]
  %s2 = inlined_call_operand.vmem [shape: f32[32,64], index: 2, kind: input, shape index: {}]
  %s3 = inlined_call_operand.vmem [shape: f32[64,32], index: 3, kind: input, shape index: {}]
  %s4 = inlined_call_operand.vmem [shape: f32[40,128], index: 4, kind: input, shape index: {}]
  %s5 = inlined_call_operand.hbm [shape: f32[32,32], index: 5, kind: output, shape index: {}]
  %s6 = sld [smem:[#allocation0]]
  $region30: #{block_forward.1} parent=0
    _
  %s8 = ssub.s32 1, %s6
  %s9 = scalar_select 0, %s8, %s6
  $region1: #{block_forward.1} parent=0
    #allocation2 [shape = 'u8[16384]{0}', space=vmem, size = 0x4000, scoped, tag = 'output window, operand 0, single buffered']
    #allocation3 [shape = 's32[1]{0}', space=sflag, size = 0x4, scoped, tag = 'scoped memory for block_forward.1']
    %10 = vsyncpa [#allocation3], 0
    // Predicated region
    $region2: #{block_forward.1} parent=1 // pred_check
      _
    $region3: #{block_forward.1} parent=1 // pred_check_branch
      %12 = sbr.rel (0) target = $region5
    $region4: #{block_forward.1} parent=1 // pred_region
      _
    $region5: #{block_forward.1} parent=1 // pred_fallthru
      _
    // Predicated region
    $region6: #{block_forward.1} parent=1 // pred_check
      _
    $region7: #{block_forward.1} parent=1 // pred_check_branch
      %14 = sbr.rel (0) target = $region9
    $region8: #{block_forward.1} parent=1 // pred_region
      _
    $region9: #{block_forward.1} parent=1 // pred_fallthru
      _
    // Predicated region
    $region10: #{block_forward.1} parent=1 // pred_check
      _
    $region11: #{block_forward.1} parent=1 // pred_check_branch
      %16 = sbr.rel (0) target = $region13
    $region12: #{block_forward.1} parent=1 // pred_region
      _
    $region13: #{block_forward.1} parent=1 // pred_fallthru
      _
    // Predicated region
    $region14: #{block_forward.1} parent=1 // pred_check
      _
    $region15: #{block_forward.1} parent=1 // pred_check_branch
      %18 = sbr.rel (0) target = $region17
    $region16: #{block_forward.1} parent=1 // pred_region
      _
    $region17: #{block_forward.1} parent=1 // pred_fallthru
      _
    // Predicated region
    $region18: #{block_forward.1} parent=1 // pred_check
      _
    $region19: #{block_forward.1} parent=1 // pred_check_branch
      %20 = sbr.rel (0) target = $region21
    $region20: #{block_forward.1} parent=1 // pred_region
      _
    $region21: #{block_forward.1} parent=1 // pred_fallthru
      _
    %v21 = vld [vmem:[%s0] sm:$0xff]
    %v22 = vld [vmem:[%s0 + $0x8] sm:$0xff]
    %v23 = vld [vmem:[%s0 + $0x10] sm:$0xff]
    %v24 = vld [vmem:[%s0 + $0x18] sm:$0xff]
    %v25 = vld [vmem:[%s4] sm:$0x1]
    %v26 = vld [vmem:[%s4 + $0x1] sm:$0x1]
    %v27 = vld [vmem:[%s4 + $0x2] sm:$0x1]
    %v28 = vld [vmem:[%s4 + $0x3] sm:$0x1]
    %v29 = vld [vmem:[%s4 + $0x4] sm:$0x1]
    %v30 = vld [vmem:[%s4 + $0x5] sm:$0x1]
    %v31 = vld [vmem:[%s4 + $0x6] sm:$0x1]
    %v32 = vld [vmem:[%s4 + $0x7] sm:$0x1]
    %v33 = vld [vmem:[%s4 + $0x8] sm:$0xff]
    %v34 = vld [vmem:[%s4 + $0x10] sm:$0xff]
    %v35 = vld [vmem:[%s4 + $0x18] sm:$0xff]
    %v36 = vld [vmem:[%s4 + $0x20] sm:$0xff]
    %v37 = vld [vmem:[%s1] sm:$0xff]
    %v38 = vld [vmem:[%s1 + $0x8] sm:$0xff]
    %v39 = vld [vmem:[%s1 + $0x10] sm:$0xff]
    %v40 = vld [vmem:[%s1 + $0x18] sm:$0xff]
    %vm41 = vcmask 261120
    %v42 = vsel %vm41, %v21, 0.0
    %43 = vadd.xlane.f32.xlu0 %v42
    %v44 = vpop.xlane.xlu0 %43
    %v45 = vsel %vm41, %v22, 0.0
    %46 = vadd.xlane.f32.xlu0 %v45
    %v47 = vpop.xlane.xlu0 %46
    %v48 = vsel %vm41, %v23, 0.0
    %49 = vadd.xlane.f32.xlu0 %v48
    %v50 = vpop.xlane.xlu0 %49
    %v51 = vsel %vm41, %v24, 0.0
    %52 = vadd.xlane.f32.xlu0 %v51
    %v53 = vpop.xlane.xlu0 %52
    %v54 = vrcp.pop 32.0
    %v55 = vmul.f32 %v44, %v54
    %v56 = vmul.f32 %v47, %v54
    %v57 = vmul.f32 %v50, %v54
    %v58 = vmul.f32 %v53, %v54
    %v59 = vsub.f32 %v21, %v55
    %v60 = vsub.f32 %v22, %v56
    %v61 = vsub.f32 %v23, %v57
    %v62 = vsub.f32 %v24, %v58
    %v63 = vmul.f32 %v59, %v59
    %v64 = vmul.f32 %v60, %v60
    %v65 = vmul.f32 %v61, %v61
    %v66 = vmul.f32 %v62, %v62
    %v67 = vsel %vm41, %v63, 0.0
    %68 = vadd.xlane.f32.xlu0 %v67
    %v69 = vpop.xlane.xlu0 %68
    %v70 = vsel %vm41, %v64, 0.0
    %71 = vadd.xlane.f32.xlu0 %v70
    %v72 = vpop.xlane.xlu0 %71
    %v73 = vsel %vm41, %v65, 0.0
    %74 = vadd.xlane.f32.xlu0 %v73
    %v75 = vpop.xlane.xlu0 %74
    %v76 = vsel %vm41, %v66, 0.0
    %77 = vadd.xlane.f32.xlu0 %v76
    %v78 = vpop.xlane.xlu0 %77
    %v79 = vmul.f32 %v69, %v54
    %v80 = vmul.f32 %v72, %v54
    %v81 = vmul.f32 %v75, %v54
    %v82 = vmul.f32 %v78, %v54
    %v83 = vadd.f32 %v79, 1e-05
    %v84 = vadd.f32 %v80, 1e-05
    %v85 = vadd.f32 %v81, 1e-05
    %v86 = vadd.f32 %v82, 1e-05
    %v87 = vrsqrt.pop %v83
    %v88 = vrsqrt.pop %v84
    %v89 = vrsqrt.pop %v85
    %v90 = vrsqrt.pop %v86
    %v91 = vmul.f32 %v59, %v87
    %v92 = vmul.f32 %v60, %v88
    %v93 = vmul.f32 %v61, %v89
    %v94 = vmul.f32 %v62, %v90
    %v95 = vlaneseq
    %v96 = vshrl.u32 %v95, 7
    %v97 = vsub.s32 0, %v96
    %v98 = vrot.slane %v25, %v97
    %v99 = vmul.f32 %v91, %v98
    %v100 = vmul.f32 %v92, %v98
    %v101 = vmul.f32 %v93, %v98
    %v102 = vmul.f32 %v94, %v98
    %v103 = vlaneseq
    %v104 = vshrl.u32 %v103, 7
    %v105 = vsub.s32 0, %v104
    %v106 = vrot.slane %v26, %v105
    %v107 = vadd.f32 %v99, %v106
    %v108 = vadd.f32 %v100, %v106
    %v109 = vadd.f32 %v101, %v106
    %v110 = vadd.f32 %v102, %v106
    %v111 = vlaneseq
    %v112 = vshrl.u32 %v111, 7
    %v113 = vsub.s32 0, %v112
    %v114 = vrot.slane %v27, %v113
    %v116 = vsel %vm41, %v107, 0
    %v119 = vsel %vm41, %v108, 0
    %v122 = vsel %vm41, %v109, 0
    %v125 = vsel %vm41, %v110, 0
    %127 = vmatprep.subr.mxu0 0.0
    %128 = vmatpush1.msra.mxu0 0.0
    %129 = vmatprep.subr.mxu0 0.0
    %130 = vmatpush1.msra.mxu0 0.0
    %131 = vmatprep.subr.mxu0 0.0
    %132 = vmatpush1.msra.mxu0 0.0
    %133 = vmatprep.subr.mxu0 0.0
    %134 = vmatpush1.msra.mxu0 0.0
    %135 = vmatprep.subr.mxu0 0.0
    %136 = vmatpush1.msra.mxu0 0.0
    %137 = vmatprep.subr.mxu0 0.0
    %138 = vmatpush1.msra.mxu0 0.0
    %139 = vmatprep.subr.mxu0 0.0
    %140 = vmatpush1.msra.mxu0 0.0
    %141 = vmatprep.subr.mxu0 0.0
    %142 = vmatpush1.msra.mxu0 0.0
    %143 = vmatprep.subr.mxu0 0.0
    %144 = vmatpush1.msra.mxu0 0.0
    %145 = vmatprep.subr.mxu0 0.0
    %146 = vmatpush1.msra.mxu0 0.0
    %147 = vmatprep.subr.mxu0 0.0
    %148 = vmatpush1.msra.mxu0 0.0
    %149 = vmatprep.subr.mxu0 0.0
    %150 = vmatpush1.msra.mxu0 0.0
    %151 = vmatprep.subr.mxu0 0.0
    %152 = vmatpush1.msra.mxu0 %v40
    %153 = vmatprep.subr.mxu0 0.0
    %154 = vmatpush1.msra.mxu0 %v39
    %155 = vmatprep.subr.mxu0 0.0
    %156 = vmatpush1.msra.mxu0 %v38
    %157 = vmatprep.subr.mxu0 0.0
    %158 = vmatpush1.msra.mxu0 %v37
    %159 = vmatprep.subr.mxu0 0.0
    %160 = vmatpush2.msra.mxu0 0.0
    %161 = vmatprep.subr.mxu0 0.0
    %162 = vmatpush2.msra.mxu0 0.0
    %163 = vmatprep.subr.mxu0 0.0
    %164 = vmatpush2.msra.mxu0 0.0
    %165 = vmatprep.subr.mxu0 0.0
    %166 = vmatpush2.msra.mxu0 0.0
    %167 = vmatprep.subr.mxu0 0.0
    %168 = vmatpush2.msra.mxu0 0.0
    %169 = vmatprep.subr.mxu0 0.0
    %170 = vmatpush2.msra.mxu0 0.0
    %171 = vmatprep.subr.mxu0 0.0
    %172 = vmatpush2.msra.mxu0 0.0
    %173 = vmatprep.subr.mxu0 0.0
    %174 = vmatpush2.msra.mxu0 0.0
    %175 = vmatprep.subr.mxu0 0.0
    %176 = vmatpush2.msra.mxu0 0.0
    %177 = vmatprep.subr.mxu0 0.0
    %178 = vmatpush2.msra.mxu0 0.0
    %179 = vmatprep.subr.mxu0 0.0
    %180 = vmatpush2.msra.mxu0 0.0
    %181 = vmatprep.subr.mxu0 0.0
    %182 = vmatpush2.msra.mxu0 0.0
    %183 = vmatprep.subr.mxu0 0.0
    %184 = vmatpush2.msra.mxu0 0.0
    %185 = vmatprep.subr.mxu0 0.0
    %186 = vmatpush2.msra.mxu0 0.0
    %187 = vmatprep.subr.mxu0 0.0
    %188 = vmatpush2.msra.mxu0 0.0
    %189 = vmatprep.subr.mxu0 0.0
    %190 = vmatpush2.msra.mxu0 0.0
    %191 = vmatprep.mubr.f32.mxu0 0.0
    %192 = vmatmul.mubr.f32.gmra.mxu0 %v116
    %v193 = vpop.f32.mrf.mxu0
    %v194 = vadd.f32 %v114, %v193
    %v195 = vpop.f32.mrf.mxu0
    %196 = vmatprep.mubr.f32.mxu0 0.0
    %197 = vmatmul.mubr.f32.gmra.mxu0 %v119
    %v198 = vpop.f32.mrf.mxu0
    %v199 = vadd.f32 %v114, %v198
    %v200 = vpop.f32.mrf.mxu0
    %201 = vmatprep.mubr.f32.mxu0 0.0
    %202 = vmatmul.mubr.f32.gmra.mxu0 %v122
    %v203 = vpop.f32.mrf.mxu0
    %v204 = vadd.f32 %v114, %v203
    %v205 = vpop.f32.mrf.mxu0
    %206 = vmatprep.mubr.f32.mxu0 0.0
    %207 = vmatmul.mubr.f32.gmra.mxu0 %v125
    %v208 = vpop.f32.mrf.mxu0
    %v209 = vadd.f32 %v114, %v208
    %v210 = vpop.f32.mrf.mxu0
    %211 = vdwg.mxu0
    %216 = vrot.lane.b32.xlu0 %v194, 96
    %v217 = vpop.permute.xlu0 %216
    %218 = vrot.lane.b32.xlu0 %v199, 96
    %v219 = vpop.permute.xlu0 %218
    %220 = vrot.lane.b32.xlu0 %v204, 96
    %v221 = vpop.permute.xlu0 %220
    %222 = vrot.lane.b32.xlu0 %v209, 96
    %v223 = vpop.permute.xlu0 %222
    %vm224 = vcmask 64512
    %v225 = vsel %vm224, %v194, 0
    %v227 = vsel %vm224, %v199, 0
    %v229 = vsel %vm224, %v204, 0
    %v231 = vsel %vm224, %v209, 0
    %v233 = vsel %vm224, %v217, 0
    %v235 = vsel %vm224, %v219, 0
    %v237 = vsel %vm224, %v221, 0
    %v239 = vsel %vm224, %v223, 0
    %241 = vmatprep.subr.mxu0 0.0
    %242 = vmatpush1.xpose.msra.mxu0 0.0
    %243 = vmatprep.subr.mxu0 0.0
    %244 = vmatpush1.xpose.msra.mxu0 0.0
    %245 = vmatprep.subr.mxu0 0.0
    %246 = vmatpush1.xpose.msra.mxu0 0.0
    %247 = vmatprep.subr.mxu0 0.0
    %248 = vmatpush1.xpose.msra.mxu0 0.0
    %249 = vmatprep.subr.mxu0 0.0
    %250 = vmatpush1.xpose.msra.mxu0 0.0
    %251 = vmatprep.subr.mxu0 0.0
    %252 = vmatpush1.xpose.msra.mxu0 0.0
    %253 = vmatprep.subr.mxu0 0.0
    %254 = vmatpush1.xpose.msra.mxu0 0.0
    %255 = vmatprep.subr.mxu0 0.0
    %256 = vmatpush1.xpose.msra.mxu0 0.0
    %257 = vmatprep.subr.mxu0 0.0
    %258 = vmatpush1.xpose.msra.mxu0 0.0
    %259 = vmatprep.subr.mxu0 0.0
    %260 = vmatpush1.xpose.msra.mxu0 0.0
    %261 = vmatprep.subr.mxu0 0.0
    %262 = vmatpush1.xpose.msra.mxu0 0.0
    %263 = vmatprep.subr.mxu0 0.0
    %264 = vmatpush1.xpose.msra.mxu0 0.0
    %265 = vmatprep.subr.mxu0 0.0
    %266 = vmatpush1.xpose.msra.mxu0 %v239
    %267 = vmatprep.subr.mxu0 0.0
    %268 = vmatpush1.xpose.msra.mxu0 %v237
    %269 = vmatprep.subr.mxu0 0.0
    %270 = vmatpush1.xpose.msra.mxu0 %v235
    %271 = vmatprep.subr.mxu0 0.0
    %272 = vmatpush1.xpose.msra.mxu0 %v233
    %273 = vmatprep.subr.mxu0 0.0
    %274 = vmatpush2.xpose.msra.mxu0 0.0
    %275 = vmatprep.subr.mxu0 0.0
    %276 = vmatpush2.xpose.msra.mxu0 0.0
    %277 = vmatprep.subr.mxu0 0.0
    %278 = vmatpush2.xpose.msra.mxu0 0.0
    %279 = vmatprep.subr.mxu0 0.0
    %280 = vmatpush2.xpose.msra.mxu0 0.0
    %281 = vmatprep.subr.mxu0 0.0
    %282 = vmatpush2.xpose.msra.mxu0 0.0
    %283 = vmatprep.subr.mxu0 0.0
    %284 = vmatpush2.xpose.msra.mxu0 0.0
    %285 = vmatprep.subr.mxu0 0.0
    %286 = vmatpush2.xpose.msra.mxu0 0.0
    %287 = vmatprep.subr.mxu0 0.0
    %288 = vmatpush2.xpose.msra.mxu0 0.0
    %289 = vmatprep.subr.mxu0 0.0
    %290 = vmatpush2.xpose.msra.mxu0 0.0
    %291 = vmatprep.subr.mxu0 0.0
    %292 = vmatpush2.xpose.msra.mxu0 0.0
    %293 = vmatprep.subr.mxu0 0.0
    %294 = vmatpush2.xpose.msra.mxu0 0.0
    %295 = vmatprep.subr.mxu0 0.0
    %296 = vmatpush2.xpose.msra.mxu0 0.0
    %297 = vmatprep.subr.mxu0 0.0
    %298 = vmatpush2.xpose.msra.mxu0 0.0
    %299 = vmatprep.subr.mxu0 0.0
    %300 = vmatpush2.xpose.msra.mxu0 0.0
    %301 = vmatprep.subr.mxu0 0.0
    %302 = vmatpush2.xpose.msra.mxu0 0.0
    %303 = vmatprep.subr.mxu0 0.0
    %304 = vmatpush2.xpose.msra.mxu0 0.0
    %305 = vmatprep.mubr.f32.mxu0 0.0
    %306 = vmatmul.mubr.f32.gmra.mxu0 %v225
    %v307 = vpop.f32.mrf.mxu0
    %v308 = vadd.f32 %v33, %v307
    %v309 = vpop.f32.mrf.mxu0
    %310 = vmatprep.mubr.f32.mxu0 0.0
    %311 = vmatmul.mubr.f32.gmra.mxu0 %v227
    %v312 = vpop.f32.mrf.mxu0
    %v313 = vadd.f32 %v34, %v312
    %v314 = vpop.f32.mrf.mxu0
    %315 = vmatprep.mubr.f32.mxu0 0.0
    %316 = vmatmul.mubr.f32.gmra.mxu0 %v229
    %v317 = vpop.f32.mrf.mxu0
    %v318 = vadd.f32 %v35, %v317
    %v319 = vpop.f32.mrf.mxu0
    %320 = vmatprep.mubr.f32.mxu0 0.0
    %321 = vmatmul.mubr.f32.gmra.mxu0 %v231
    %v322 = vpop.f32.mrf.mxu0
    %v323 = vadd.f32 %v36, %v322
    %v324 = vpop.f32.mrf.mxu0
    %325 = vdwg.mxu0
    %v326 = vsel %vm41, %v308, -inf
    %327 = vmax.xlane.f32.xlu0 %v326
    %v328 = vpop.xlane.xlu0 %327
    %v329 = vsel %vm41, %v313, -inf
    %330 = vmax.xlane.f32.xlu0 %v329
    %v331 = vpop.xlane.xlu0 %330
    %v332 = vsel %vm41, %v318, -inf
    %333 = vmax.xlane.f32.xlu0 %v332
    %v334 = vpop.xlane.xlu0 %333
    %v335 = vsel %vm41, %v323, -inf
    %336 = vmax.xlane.f32.xlu0 %v335
    %v337 = vpop.xlane.xlu0 %336
    %v338 = vsub.f32 %v308, %v328
    %v339 = vsub.f32 %v313, %v331
    %v340 = vsub.f32 %v318, %v334
    %v341 = vsub.f32 %v323, %v337
    %v342 = vmul.f32 %v338, 1.442695
    %v343 = vpow.pop %v342
    %v344 = vmul.f32 %v339, 1.442695
    %v345 = vpow.pop %v344
    %v346 = vmul.f32 %v340, 1.442695
    %v347 = vpow.pop %v346
    %v348 = vmul.f32 %v341, 1.442695
    %v349 = vpow.pop %v348
    %v350 = vsel %vm41, %v343, 0.0
    %351 = vadd.xlane.f32.xlu0 %v350
    %v352 = vpop.xlane.xlu0 %351
    %v353 = vsel %vm41, %v345, 0.0
    %354 = vadd.xlane.f32.xlu0 %v353
    %v355 = vpop.xlane.xlu0 %354
    %v356 = vsel %vm41, %v347, 0.0
    %357 = vadd.xlane.f32.xlu0 %v356
    %v358 = vpop.xlane.xlu0 %357
    %v359 = vsel %vm41, %v349, 0.0
    %360 = vadd.xlane.f32.xlu0 %v359
    %v361 = vpop.xlane.xlu0 %360
    %v362 = vrcp.pop %v352
    %v363 = vrcp.pop %v355
    %v364 = vrcp.pop %v358
    %v365 = vrcp.pop %v361
    %v366 = vmul.f32 %v343, %v362
    %v367 = vmul.f32 %v345, %v363
    %v368 = vmul.f32 %v347, %v364
    %v369 = vmul.f32 %v349, %v365
    %370 = vrot.lane.b32.xlu0 %v194, 64
    %v371 = vpop.permute.xlu0 %370
    %372 = vrot.lane.b32.xlu0 %v199, 64
    %v373 = vpop.permute.xlu0 %372
    %374 = vrot.lane.b32.xlu0 %v204, 64
    %v375 = vpop.permute.xlu0 %374
    %376 = vrot.lane.b32.xlu0 %v209, 64
    %v377 = vpop.permute.xlu0 %376
    %v383 = vsel %vm41, %v366, 0
    %v386 = vsel %vm41, %v367, 0
    %v389 = vsel %vm41, %v368, 0
    %v392 = vsel %vm41, %v369, 0
    %394 = vmatprep.subr.mxu0 0.0
    %395 = vmatpush1.msra.mxu0 0.0
    %396 = vmatprep.subr.mxu0 0.0
    %397 = vmatpush1.msra.mxu0 0.0
    %398 = vmatprep.subr.mxu0 0.0
    %399 = vmatpush1.msra.mxu0 0.0
    %400 = vmatprep.subr.mxu0 0.0
    %401 = vmatpush1.msra.mxu0 0.0
    %402 = vmatprep.subr.mxu0 0.0
    %403 = vmatpush1.msra.mxu0 0.0
    %404 = vmatprep.subr.mxu0 0.0
    %405 = vmatpush1.msra.mxu0 0.0
    %406 = vmatprep.subr.mxu0 0.0
    %407 = vmatpush1.msra.mxu0 0.0
    %408 = vmatprep.subr.mxu0 0.0
    %409 = vmatpush1.msra.mxu0 0.0
    %410 = vmatprep.subr.mxu0 0.0
    %411 = vmatpush1.msra.mxu0 0.0
    %412 = vmatprep.subr.mxu0 0.0
    %413 = vmatpush1.msra.mxu0 0.0
    %414 = vmatprep.subr.mxu0 0.0
    %415 = vmatpush1.msra.mxu0 0.0
    %416 = vmatprep.subr.mxu0 0.0
    %417 = vmatpush1.msra.mxu0 0.0
    %418 = vmatprep.subr.mxu0 0.0
    %419 = vmatpush1.msra.mxu0 %v377
    %420 = vmatprep.subr.mxu0 0.0
    %421 = vmatpush1.msra.mxu0 %v375
    %422 = vmatprep.subr.mxu0 0.0
    %423 = vmatpush1.msra.mxu0 %v373
    %424 = vmatprep.subr.mxu0 0.0
    %425 = vmatpush1.msra.mxu0 %v371
    %426 = vmatprep.subr.mxu0 0.0
    %427 = vmatpush2.msra.mxu0 0.0
    %428 = vmatprep.subr.mxu0 0.0
    %429 = vmatpush2.msra.mxu0 0.0
    %430 = vmatprep.subr.mxu0 0.0
    %431 = vmatpush2.msra.mxu0 0.0
    %432 = vmatprep.subr.mxu0 0.0
    %433 = vmatpush2.msra.mxu0 0.0
    %434 = vmatprep.subr.mxu0 0.0
    %435 = vmatpush2.msra.mxu0 0.0
    %436 = vmatprep.subr.mxu0 0.0
    %437 = vmatpush2.msra.mxu0 0.0
    %438 = vmatprep.subr.mxu0 0.0
    %439 = vmatpush2.msra.mxu0 0.0
    %440 = vmatprep.subr.mxu0 0.0
    %441 = vmatpush2.msra.mxu0 0.0
    %442 = vmatprep.subr.mxu0 0.0
    %443 = vmatpush2.msra.mxu0 0.0
    %444 = vmatprep.subr.mxu0 0.0
    %445 = vmatpush2.msra.mxu0 0.0
    %446 = vmatprep.subr.mxu0 0.0
    %447 = vmatpush2.msra.mxu0 0.0
    %448 = vmatprep.subr.mxu0 0.0
    %449 = vmatpush2.msra.mxu0 0.0
    %450 = vmatprep.subr.mxu0 0.0
    %451 = vmatpush2.msra.mxu0 0.0
    %452 = vmatprep.subr.mxu0 0.0
    %453 = vmatpush2.msra.mxu0 0.0
    %454 = vmatprep.subr.mxu0 0.0
    %455 = vmatpush2.msra.mxu0 0.0
    %456 = vmatprep.subr.mxu0 0.0
    %457 = vmatpush2.msra.mxu0 0.0
    %458 = vmatprep.mubr.f32.mxu0 0.0
    %459 = vmatmul.mubr.f32.gmra.mxu0 %v383
    %v460 = vpop.f32.mrf.mxu0
    %v461 = vadd.f32 0.0, %v460
    %v462 = vpop.f32.mrf.mxu0
    %463 = vmatprep.mubr.f32.mxu0 0.0
    %464 = vmatmul.mubr.f32.gmra.mxu0 %v386
    %v465 = vpop.f32.mrf.mxu0
    %v466 = vadd.f32 0.0, %v465
    %v467 = vpop.f32.mrf.mxu0
    %468 = vmatprep.mubr.f32.mxu0 0.0
    %469 = vmatmul.mubr.f32.gmra.mxu0 %v389
    %v470 = vpop.f32.mrf.mxu0
    %v471 = vadd.f32 0.0, %v470
    %v472 = vpop.f32.mrf.mxu0
    %473 = vmatprep.mubr.f32.mxu0 0.0
    %474 = vmatmul.mubr.f32.gmra.mxu0 %v392
    %v475 = vpop.f32.mrf.mxu0
    %v476 = vadd.f32 0.0, %v475
    %v477 = vpop.f32.mrf.mxu0
    %478 = vdwg.mxu0
    %479 = vrot.lane.b32.xlu0 %v194, 120
    %v480 = vpop.permute.xlu0 %479
    %481 = vrot.lane.b32.xlu0 %v199, 120
    %v482 = vpop.permute.xlu0 %481
    %483 = vrot.lane.b32.xlu0 %v204, 120
    %v484 = vpop.permute.xlu0 %483
    %485 = vrot.lane.b32.xlu0 %v209, 120
    %v486 = vpop.permute.xlu0 %485
    %487 = vrot.lane.b32.xlu0 %v194, 88
    %v488 = vpop.permute.xlu0 %487
    %489 = vrot.lane.b32.xlu0 %v199, 88
    %v490 = vpop.permute.xlu0 %489
    %491 = vrot.lane.b32.xlu0 %v204, 88
    %v492 = vpop.permute.xlu0 %491
    %493 = vrot.lane.b32.xlu0 %v209, 88
    %v494 = vpop.permute.xlu0 %493
    %v495 = vsel %vm224, %v480, 0
    %v497 = vsel %vm224, %v482, 0
    %v499 = vsel %vm224, %v484, 0
    %v501 = vsel %vm224, %v486, 0
    %v503 = vsel %vm224, %v488, 0
    %v505 = vsel %vm224, %v490, 0
    %v507 = vsel %vm224, %v492, 0
    %v509 = vsel %vm224, %v494, 0
    %511 = vmatprep.subr.mxu0 0.0
    %512 = vmatpush1.xpose.msra.mxu0 0.0
    %513 = vmatprep.subr.mxu0 0.0
    %514 = vmatpush1.xpose.msra.mxu0 0.0
    %515 = vmatprep.subr.mxu0 0.0
    %516 = vmatpush1.xpose.msra.mxu0 0.0
    %517 = vmatprep.subr.mxu0 0.0
    %518 = vmatpush1.xpose.msra.mxu0 0.0
    %519 = vmatprep.subr.mxu0 0.0
    %520 = vmatpush1.xpose.msra.mxu0 0.0
    %521 = vmatprep.subr.mxu0 0.0
    %522 = vmatpush1.xpose.msra.mxu0 0.0
    %523 = vmatprep.subr.mxu0 0.0
    %524 = vmatpush1.xpose.msra.mxu0 0.0
    %525 = vmatprep.subr.mxu0 0.0
    %526 = vmatpush1.xpose.msra.mxu0 0.0
    %527 = vmatprep.subr.mxu0 0.0
    %528 = vmatpush1.xpose.msra.mxu0 0.0
    %529 = vmatprep.subr.mxu0 0.0
    %530 = vmatpush1.xpose.msra.mxu0 0.0
    %531 = vmatprep.subr.mxu0 0.0
    %532 = vmatpush1.xpose.msra.mxu0 0.0
    %533 = vmatprep.subr.mxu0 0.0
    %534 = vmatpush1.xpose.msra.mxu0 0.0
    %535 = vmatprep.subr.mxu0 0.0
    %536 = vmatpush1.xpose.msra.mxu0 %v509
    %537 = vmatprep.subr.mxu0 0.0
    %538 = vmatpush1.xpose.msra.mxu0 %v507
    %539 = vmatprep.subr.mxu0 0.0
    %540 = vmatpush1.xpose.msra.mxu0 %v505
    %541 = vmatprep.subr.mxu0 0.0
    %542 = vmatpush1.xpose.msra.mxu0 %v503
    %543 = vmatprep.subr.mxu0 0.0
    %544 = vmatpush2.xpose.msra.mxu0 0.0
    %545 = vmatprep.subr.mxu0 0.0
    %546 = vmatpush2.xpose.msra.mxu0 0.0
    %547 = vmatprep.subr.mxu0 0.0
    %548 = vmatpush2.xpose.msra.mxu0 0.0
    %549 = vmatprep.subr.mxu0 0.0
    %550 = vmatpush2.xpose.msra.mxu0 0.0
    %551 = vmatprep.subr.mxu0 0.0
    %552 = vmatpush2.xpose.msra.mxu0 0.0
    %553 = vmatprep.subr.mxu0 0.0
    %554 = vmatpush2.xpose.msra.mxu0 0.0
    %555 = vmatprep.subr.mxu0 0.0
    %556 = vmatpush2.xpose.msra.mxu0 0.0
    %557 = vmatprep.subr.mxu0 0.0
    %558 = vmatpush2.xpose.msra.mxu0 0.0
    %559 = vmatprep.subr.mxu0 0.0
    %560 = vmatpush2.xpose.msra.mxu0 0.0
    %561 = vmatprep.subr.mxu0 0.0
    %562 = vmatpush2.xpose.msra.mxu0 0.0
    %563 = vmatprep.subr.mxu0 0.0
    %564 = vmatpush2.xpose.msra.mxu0 0.0
    %565 = vmatprep.subr.mxu0 0.0
    %566 = vmatpush2.xpose.msra.mxu0 0.0
    %567 = vmatprep.subr.mxu0 0.0
    %568 = vmatpush2.xpose.msra.mxu0 0.0
    %569 = vmatprep.subr.mxu0 0.0
    %570 = vmatpush2.xpose.msra.mxu0 0.0
    %571 = vmatprep.subr.mxu0 0.0
    %572 = vmatpush2.xpose.msra.mxu0 0.0
    %573 = vmatprep.subr.mxu0 0.0
    %574 = vmatpush2.xpose.msra.mxu0 0.0
    %575 = vmatprep.mubr.f32.mxu0 0.0
    %576 = vmatmul.mubr.f32.gmra.mxu0 %v495
    %v577 = vpop.f32.mrf.mxu0
    %v578 = vadd.f32 %v33, %v577
    %v579 = vpop.f32.mrf.mxu0
    %580 = vmatprep.mubr.f32.mxu0 0.0
    %581 = vmatmul.mubr.f32.gmra.mxu0 %v497
    %v582 = vpop.f32.mrf.mxu0
    %v583 = vadd.f32 %v34, %v582
    %v584 = vpop.f32.mrf.mxu0
    %585 = vmatprep.mubr.f32.mxu0 0.0
    %586 = vmatmul.mubr.f32.gmra.mxu0 %v499
    %v587 = vpop.f32.mrf.mxu0
    %v588 = vadd.f32 %v35, %v587
    %v589 = vpop.f32.mrf.mxu0
    %590 = vmatprep.mubr.f32.mxu0 0.0
    %591 = vmatmul.mubr.f32.gmra.mxu0 %v501
    %v592 = vpop.f32.mrf.mxu0
    %v593 = vadd.f32 %v36, %v592
    %v594 = vpop.f32.mrf.mxu0
    %595 = vdwg.mxu0
    %v596 = vsel %vm41, %v578, -inf
    %597 = vmax.xlane.f32.xlu0 %v596
    %v598 = vpop.xlane.xlu0 %597
    %v599 = vsel %vm41, %v583, -inf
    %600 = vmax.xlane.f32.xlu0 %v599
    %v601 = vpop.xlane.xlu0 %600
    %v602 = vsel %vm41, %v588, -inf
    %603 = vmax.xlane.f32.xlu0 %v602
    %v604 = vpop.xlane.xlu0 %603
    %v605 = vsel %vm41, %v593, -inf
    %606 = vmax.xlane.f32.xlu0 %v605
    %v607 = vpop.xlane.xlu0 %606
    %v608 = vsub.f32 %v578, %v598
    %v609 = vsub.f32 %v583, %v601
    %v610 = vsub.f32 %v588, %v604
    %v611 = vsub.f32 %v593, %v607
    %v612 = vmul.f32 %v608, 1.442695
    %v613 = vpow.pop %v612
    %v614 = vmul.f32 %v609, 1.442695
    %v615 = vpow.pop %v614
    %v616 = vmul.f32 %v610, 1.442695
    %v617 = vpow.pop %v616
    %v618 = vmul.f32 %v611, 1.442695
    %v619 = vpow.pop %v618
    %v620 = vsel %vm41, %v613, 0.0
    %621 = vadd.xlane.f32.xlu0 %v620
    %v622 = vpop.xlane.xlu0 %621
    %v623 = vsel %vm41, %v615, 0.0
    %624 = vadd.xlane.f32.xlu0 %v623
    %v625 = vpop.xlane.xlu0 %624
    %v626 = vsel %vm41, %v617, 0.0
    %627 = vadd.xlane.f32.xlu0 %v626
    %v628 = vpop.xlane.xlu0 %627
    %v629 = vsel %vm41, %v619, 0.0
    %630 = vadd.xlane.f32.xlu0 %v629
    %v631 = vpop.xlane.xlu0 %630
    %v632 = vrcp.pop %v622
    %v633 = vrcp.pop %v625
    %v634 = vrcp.pop %v628
    %v635 = vrcp.pop %v631
    %v636 = vmul.f32 %v613, %v632
    %v637 = vmul.f32 %v615, %v633
    %v638 = vmul.f32 %v617, %v634
    %v639 = vmul.f32 %v619, %v635
    %640 = vrot.lane.b32.xlu0 %v194, 56
    %v641 = vpop.permute.xlu0 %640
    %642 = vrot.lane.b32.xlu0 %v199, 56
    %v643 = vpop.permute.xlu0 %642
    %644 = vrot.lane.b32.xlu0 %v204, 56
    %v645 = vpop.permute.xlu0 %644
    %646 = vrot.lane.b32.xlu0 %v209, 56
    %v647 = vpop.permute.xlu0 %646
    %v653 = vsel %vm41, %v636, 0
    %v656 = vsel %vm41, %v637, 0
    %v659 = vsel %vm41, %v638, 0
    %v662 = vsel %vm41, %v639, 0
    %664 = vmatprep.subr.mxu0 0.0
    %665 = vmatpush1.msra.mxu0 0.0
    %666 = vmatprep.subr.mxu0 0.0
    %667 = vmatpush1.msra.mxu0 0.0
    %668 = vmatprep.subr.mxu0 0.0
    %669 = vmatpush1.msra.mxu0 0.0
    %670 = vmatprep.subr.mxu0 0.0
    %671 = vmatpush1.msra.mxu0 0.0
    %672 = vmatprep.subr.mxu0 0.0
    %673 = vmatpush1.msra.mxu0 0.0
    %674 = vmatprep.subr.mxu0 0.0
    %675 = vmatpush1.msra.mxu0 0.0
    %676 = vmatprep.subr.mxu0 0.0
    %677 = vmatpush1.msra.mxu0 0.0
    %678 = vmatprep.subr.mxu0 0.0
    %679 = vmatpush1.msra.mxu0 0.0
    %680 = vmatprep.subr.mxu0 0.0
    %681 = vmatpush1.msra.mxu0 0.0
    %682 = vmatprep.subr.mxu0 0.0
    %683 = vmatpush1.msra.mxu0 0.0
    %684 = vmatprep.subr.mxu0 0.0
    %685 = vmatpush1.msra.mxu0 0.0
    %686 = vmatprep.subr.mxu0 0.0
    %687 = vmatpush1.msra.mxu0 0.0
    %688 = vmatprep.subr.mxu0 0.0
    %689 = vmatpush1.msra.mxu0 %v647
    %690 = vmatprep.subr.mxu0 0.0
    %691 = vmatpush1.msra.mxu0 %v645
    %692 = vmatprep.subr.mxu0 0.0
    %693 = vmatpush1.msra.mxu0 %v643
    %694 = vmatprep.subr.mxu0 0.0
    %695 = vmatpush1.msra.mxu0 %v641
    %696 = vmatprep.subr.mxu0 0.0
    %697 = vmatpush2.msra.mxu0 0.0
    %698 = vmatprep.subr.mxu0 0.0
    %699 = vmatpush2.msra.mxu0 0.0
    %700 = vmatprep.subr.mxu0 0.0
    %701 = vmatpush2.msra.mxu0 0.0
    %702 = vmatprep.subr.mxu0 0.0
    %703 = vmatpush2.msra.mxu0 0.0
    %704 = vmatprep.subr.mxu0 0.0
    %705 = vmatpush2.msra.mxu0 0.0
    %706 = vmatprep.subr.mxu0 0.0
    %707 = vmatpush2.msra.mxu0 0.0
    %708 = vmatprep.subr.mxu0 0.0
    %709 = vmatpush2.msra.mxu0 0.0
    %710 = vmatprep.subr.mxu0 0.0
    %711 = vmatpush2.msra.mxu0 0.0
    %712 = vmatprep.subr.mxu0 0.0
    %713 = vmatpush2.msra.mxu0 0.0
    %714 = vmatprep.subr.mxu0 0.0
    %715 = vmatpush2.msra.mxu0 0.0
    %716 = vmatprep.subr.mxu0 0.0
    %717 = vmatpush2.msra.mxu0 0.0
    %718 = vmatprep.subr.mxu0 0.0
    %719 = vmatpush2.msra.mxu0 0.0
    %720 = vmatprep.subr.mxu0 0.0
    %721 = vmatpush2.msra.mxu0 0.0
    %722 = vmatprep.subr.mxu0 0.0
    %723 = vmatpush2.msra.mxu0 0.0
    %724 = vmatprep.subr.mxu0 0.0
    %725 = vmatpush2.msra.mxu0 0.0
    %726 = vmatprep.subr.mxu0 0.0
    %727 = vmatpush2.msra.mxu0 0.0
    %728 = vmatprep.mubr.f32.mxu0 0.0
    %729 = vmatmul.mubr.f32.gmra.mxu0 %v653
    %v730 = vpop.f32.mrf.mxu0
    %v731 = vadd.f32 0.0, %v730
    %v732 = vpop.f32.mrf.mxu0
    %733 = vmatprep.mubr.f32.mxu0 0.0
    %734 = vmatmul.mubr.f32.gmra.mxu0 %v656
    %v735 = vpop.f32.mrf.mxu0
    %v736 = vadd.f32 0.0, %v735
    %v737 = vpop.f32.mrf.mxu0
    %738 = vmatprep.mubr.f32.mxu0 0.0
    %739 = vmatmul.mubr.f32.gmra.mxu0 %v659
    %v740 = vpop.f32.mrf.mxu0
    %v741 = vadd.f32 0.0, %v740
    %v742 = vpop.f32.mrf.mxu0
    %743 = vmatprep.mubr.f32.mxu0 0.0
    %744 = vmatmul.mubr.f32.gmra.mxu0 %v662
    %v745 = vpop.f32.mrf.mxu0
    %v746 = vadd.f32 0.0, %v745
    %v747 = vpop.f32.mrf.mxu0
    %748 = vdwg.mxu0
    %749 = vrot.lane.b32.xlu0 %v194, 112
    %v750 = vpop.permute.xlu0 %749
    %751 = vrot.lane.b32.xlu0 %v199, 112
    %v752 = vpop.permute.xlu0 %751
    %753 = vrot.lane.b32.xlu0 %v204, 112
    %v754 = vpop.permute.xlu0 %753
    %755 = vrot.lane.b32.xlu0 %v209, 112
    %v756 = vpop.permute.xlu0 %755
    %757 = vrot.lane.b32.xlu0 %v194, 80
    %v758 = vpop.permute.xlu0 %757
    %759 = vrot.lane.b32.xlu0 %v199, 80
    %v760 = vpop.permute.xlu0 %759
    %761 = vrot.lane.b32.xlu0 %v204, 80
    %v762 = vpop.permute.xlu0 %761
    %763 = vrot.lane.b32.xlu0 %v209, 80
    %v764 = vpop.permute.xlu0 %763
    %v765 = vsel %vm224, %v750, 0
    %v767 = vsel %vm224, %v752, 0
    %v769 = vsel %vm224, %v754, 0
    %v771 = vsel %vm224, %v756, 0
    %v773 = vsel %vm224, %v758, 0
    %v775 = vsel %vm224, %v760, 0
    %v777 = vsel %vm224, %v762, 0
    %v779 = vsel %vm224, %v764, 0
    %781 = vmatprep.subr.mxu0 0.0
    %782 = vmatpush1.xpose.msra.mxu0 0.0
    %783 = vmatprep.subr.mxu0 0.0
    %784 = vmatpush1.xpose.msra.mxu0 0.0
    %785 = vmatprep.subr.mxu0 0.0
    %786 = vmatpush1.xpose.msra.mxu0 0.0
    %787 = vmatprep.subr.mxu0 0.0
    %788 = vmatpush1.xpose.msra.mxu0 0.0
    %789 = vmatprep.subr.mxu0 0.0
    %790 = vmatpush1.xpose.msra.mxu0 0.0
    %791 = vmatprep.subr.mxu0 0.0
    %792 = vmatpush1.xpose.msra.mxu0 0.0
    %793 = vmatprep.subr.mxu0 0.0
    %794 = vmatpush1.xpose.msra.mxu0 0.0
    %795 = vmatprep.subr.mxu0 0.0
    %796 = vmatpush1.xpose.msra.mxu0 0.0
    %797 = vmatprep.subr.mxu0 0.0
    %798 = vmatpush1.xpose.msra.mxu0 0.0
    %799 = vmatprep.subr.mxu0 0.0
    %800 = vmatpush1.xpose.msra.mxu0 0.0
    %801 = vmatprep.subr.mxu0 0.0
    %802 = vmatpush1.xpose.msra.mxu0 0.0
    %803 = vmatprep.subr.mxu0 0.0
    %804 = vmatpush1.xpose.msra.mxu0 0.0
    %805 = vmatprep.subr.mxu0 0.0
    %806 = vmatpush1.xpose.msra.mxu0 %v779
    %807 = vmatprep.subr.mxu0 0.0
    %808 = vmatpush1.xpose.msra.mxu0 %v777
    %809 = vmatprep.subr.mxu0 0.0
    %810 = vmatpush1.xpose.msra.mxu0 %v775
    %811 = vmatprep.subr.mxu0 0.0
    %812 = vmatpush1.xpose.msra.mxu0 %v773
    %813 = vmatprep.subr.mxu0 0.0
    %814 = vmatpush2.xpose.msra.mxu0 0.0
    %815 = vmatprep.subr.mxu0 0.0
    %816 = vmatpush2.xpose.msra.mxu0 0.0
    %817 = vmatprep.subr.mxu0 0.0
    %818 = vmatpush2.xpose.msra.mxu0 0.0
    %819 = vmatprep.subr.mxu0 0.0
    %820 = vmatpush2.xpose.msra.mxu0 0.0
    %821 = vmatprep.subr.mxu0 0.0
    %822 = vmatpush2.xpose.msra.mxu0 0.0
    %823 = vmatprep.subr.mxu0 0.0
    %824 = vmatpush2.xpose.msra.mxu0 0.0
    %825 = vmatprep.subr.mxu0 0.0
    %826 = vmatpush2.xpose.msra.mxu0 0.0
    %827 = vmatprep.subr.mxu0 0.0
    %828 = vmatpush2.xpose.msra.mxu0 0.0
    %829 = vmatprep.subr.mxu0 0.0
    %830 = vmatpush2.xpose.msra.mxu0 0.0
    %831 = vmatprep.subr.mxu0 0.0
    %832 = vmatpush2.xpose.msra.mxu0 0.0
    %833 = vmatprep.subr.mxu0 0.0
    %834 = vmatpush2.xpose.msra.mxu0 0.0
    %835 = vmatprep.subr.mxu0 0.0
    %836 = vmatpush2.xpose.msra.mxu0 0.0
    %837 = vmatprep.subr.mxu0 0.0
    %838 = vmatpush2.xpose.msra.mxu0 0.0
    %839 = vmatprep.subr.mxu0 0.0
    %840 = vmatpush2.xpose.msra.mxu0 0.0
    %841 = vmatprep.subr.mxu0 0.0
    %842 = vmatpush2.xpose.msra.mxu0 0.0
    %843 = vmatprep.subr.mxu0 0.0
    %844 = vmatpush2.xpose.msra.mxu0 0.0
    %845 = vmatprep.mubr.f32.mxu0 0.0
    %846 = vmatmul.mubr.f32.gmra.mxu0 %v765
    %v847 = vpop.f32.mrf.mxu0
    %v848 = vadd.f32 %v33, %v847
    %v849 = vpop.f32.mrf.mxu0
    %850 = vmatprep.mubr.f32.mxu0 0.0
    %851 = vmatmul.mubr.f32.gmra.mxu0 %v767
    %v852 = vpop.f32.mrf.mxu0
    %v853 = vadd.f32 %v34, %v852
    %v854 = vpop.f32.mrf.mxu0
    %855 = vmatprep.mubr.f32.mxu0 0.0
    %856 = vmatmul.mubr.f32.gmra.mxu0 %v769
    %v857 = vpop.f32.mrf.mxu0
    %v858 = vadd.f32 %v35, %v857
    %v859 = vpop.f32.mrf.mxu0
    %860 = vmatprep.mubr.f32.mxu0 0.0
    %861 = vmatmul.mubr.f32.gmra.mxu0 %v771
    %v862 = vpop.f32.mrf.mxu0
    %v863 = vadd.f32 %v36, %v862
    %v864 = vpop.f32.mrf.mxu0
    %865 = vdwg.mxu0
    %v866 = vsel %vm41, %v848, -inf
    %867 = vmax.xlane.f32.xlu0 %v866
    %v868 = vpop.xlane.xlu0 %867
    %v869 = vsel %vm41, %v853, -inf
    %870 = vmax.xlane.f32.xlu0 %v869
    %v871 = vpop.xlane.xlu0 %870
    %v872 = vsel %vm41, %v858, -inf
    %873 = vmax.xlane.f32.xlu0 %v872
    %v874 = vpop.xlane.xlu0 %873
    %v875 = vsel %vm41, %v863, -inf
    %876 = vmax.xlane.f32.xlu0 %v875
    %v877 = vpop.xlane.xlu0 %876
    %v878 = vsub.f32 %v848, %v868
    %v879 = vsub.f32 %v853, %v871
    %v880 = vsub.f32 %v858, %v874
    %v881 = vsub.f32 %v863, %v877
    %v882 = vmul.f32 %v878, 1.442695
    %v883 = vpow.pop %v882
    %v884 = vmul.f32 %v879, 1.442695
    %v885 = vpow.pop %v884
    %v886 = vmul.f32 %v880, 1.442695
    %v887 = vpow.pop %v886
    %v888 = vmul.f32 %v881, 1.442695
    %v889 = vpow.pop %v888
    %v890 = vsel %vm41, %v883, 0.0
    %891 = vadd.xlane.f32.xlu0 %v890
    %v892 = vpop.xlane.xlu0 %891
    %v893 = vsel %vm41, %v885, 0.0
    %894 = vadd.xlane.f32.xlu0 %v893
    %v895 = vpop.xlane.xlu0 %894
    %v896 = vsel %vm41, %v887, 0.0
    %897 = vadd.xlane.f32.xlu0 %v896
    %v898 = vpop.xlane.xlu0 %897
    %v899 = vsel %vm41, %v889, 0.0
    %900 = vadd.xlane.f32.xlu0 %v899
    %v901 = vpop.xlane.xlu0 %900
    %v902 = vrcp.pop %v892
    %v903 = vrcp.pop %v895
    %v904 = vrcp.pop %v898
    %v905 = vrcp.pop %v901
    %v906 = vmul.f32 %v883, %v902
    %v907 = vmul.f32 %v885, %v903
    %v908 = vmul.f32 %v887, %v904
    %v909 = vmul.f32 %v889, %v905
    %910 = vrot.lane.b32.xlu0 %v194, 48
    %v911 = vpop.permute.xlu0 %910
    %912 = vrot.lane.b32.xlu0 %v199, 48
    %v913 = vpop.permute.xlu0 %912
    %914 = vrot.lane.b32.xlu0 %v204, 48
    %v915 = vpop.permute.xlu0 %914
    %916 = vrot.lane.b32.xlu0 %v209, 48
    %v917 = vpop.permute.xlu0 %916
    %v923 = vsel %vm41, %v906, 0
    %v926 = vsel %vm41, %v907, 0
    %v929 = vsel %vm41, %v908, 0
    %v932 = vsel %vm41, %v909, 0
    %934 = vmatprep.subr.mxu0 0.0
    %935 = vmatpush1.msra.mxu0 0.0
    %936 = vmatprep.subr.mxu0 0.0
    %937 = vmatpush1.msra.mxu0 0.0
    %938 = vmatprep.subr.mxu0 0.0
    %939 = vmatpush1.msra.mxu0 0.0
    %940 = vmatprep.subr.mxu0 0.0
    %941 = vmatpush1.msra.mxu0 0.0
    %942 = vmatprep.subr.mxu0 0.0
    %943 = vmatpush1.msra.mxu0 0.0
    %944 = vmatprep.subr.mxu0 0.0
    %945 = vmatpush1.msra.mxu0 0.0
    %946 = vmatprep.subr.mxu0 0.0
    %947 = vmatpush1.msra.mxu0 0.0
    %948 = vmatprep.subr.mxu0 0.0
    %949 = vmatpush1.msra.mxu0 0.0
    %950 = vmatprep.subr.mxu0 0.0
    %951 = vmatpush1.msra.mxu0 0.0
    %952 = vmatprep.subr.mxu0 0.0
    %953 = vmatpush1.msra.mxu0 0.0
    %954 = vmatprep.subr.mxu0 0.0
    %955 = vmatpush1.msra.mxu0 0.0
    %956 = vmatprep.subr.mxu0 0.0
    %957 = vmatpush1.msra.mxu0 0.0
    %958 = vmatprep.subr.mxu0 0.0
    %959 = vmatpush1.msra.mxu0 %v917
    %960 = vmatprep.subr.mxu0 0.0
    %961 = vmatpush1.msra.mxu0 %v915
    %962 = vmatprep.subr.mxu0 0.0
    %963 = vmatpush1.msra.mxu0 %v913
    %964 = vmatprep.subr.mxu0 0.0
    %965 = vmatpush1.msra.mxu0 %v911
    %966 = vmatprep.subr.mxu0 0.0
    %967 = vmatpush2.msra.mxu0 0.0
    %968 = vmatprep.subr.mxu0 0.0
    %969 = vmatpush2.msra.mxu0 0.0
    %970 = vmatprep.subr.mxu0 0.0
    %971 = vmatpush2.msra.mxu0 0.0
    %972 = vmatprep.subr.mxu0 0.0
    %973 = vmatpush2.msra.mxu0 0.0
    %974 = vmatprep.subr.mxu0 0.0
    %975 = vmatpush2.msra.mxu0 0.0
    %976 = vmatprep.subr.mxu0 0.0
    %977 = vmatpush2.msra.mxu0 0.0
    %978 = vmatprep.subr.mxu0 0.0
    %979 = vmatpush2.msra.mxu0 0.0
    %980 = vmatprep.subr.mxu0 0.0
    %981 = vmatpush2.msra.mxu0 0.0
    %982 = vmatprep.subr.mxu0 0.0
    %983 = vmatpush2.msra.mxu0 0.0
    %984 = vmatprep.subr.mxu0 0.0
    %985 = vmatpush2.msra.mxu0 0.0
    %986 = vmatprep.subr.mxu0 0.0
    %987 = vmatpush2.msra.mxu0 0.0
    %988 = vmatprep.subr.mxu0 0.0
    %989 = vmatpush2.msra.mxu0 0.0
    %990 = vmatprep.subr.mxu0 0.0
    %991 = vmatpush2.msra.mxu0 0.0
    %992 = vmatprep.subr.mxu0 0.0
    %993 = vmatpush2.msra.mxu0 0.0
    %994 = vmatprep.subr.mxu0 0.0
    %995 = vmatpush2.msra.mxu0 0.0
    %996 = vmatprep.subr.mxu0 0.0
    %997 = vmatpush2.msra.mxu0 0.0
    %998 = vmatprep.mubr.f32.mxu0 0.0
    %999 = vmatmul.mubr.f32.gmra.mxu0 %v923
    %v1000 = vpop.f32.mrf.mxu0
    %v1001 = vadd.f32 0.0, %v1000
    %v1002 = vpop.f32.mrf.mxu0
    %1003 = vmatprep.mubr.f32.mxu0 0.0
    %1004 = vmatmul.mubr.f32.gmra.mxu0 %v926
    %v1005 = vpop.f32.mrf.mxu0
    %v1006 = vadd.f32 0.0, %v1005
    %v1007 = vpop.f32.mrf.mxu0
    %1008 = vmatprep.mubr.f32.mxu0 0.0
    %1009 = vmatmul.mubr.f32.gmra.mxu0 %v929
    %v1010 = vpop.f32.mrf.mxu0
    %v1011 = vadd.f32 0.0, %v1010
    %v1012 = vpop.f32.mrf.mxu0
    %1013 = vmatprep.mubr.f32.mxu0 0.0
    %1014 = vmatmul.mubr.f32.gmra.mxu0 %v932
    %v1015 = vpop.f32.mrf.mxu0
    %v1016 = vadd.f32 0.0, %v1015
    %v1017 = vpop.f32.mrf.mxu0
    %1018 = vdwg.mxu0
    %1019 = vrot.lane.b32.xlu0 %v194, 104
    %v1020 = vpop.permute.xlu0 %1019
    %1021 = vrot.lane.b32.xlu0 %v199, 104
    %v1022 = vpop.permute.xlu0 %1021
    %1023 = vrot.lane.b32.xlu0 %v204, 104
    %v1024 = vpop.permute.xlu0 %1023
    %1025 = vrot.lane.b32.xlu0 %v209, 104
    %v1026 = vpop.permute.xlu0 %1025
    %1027 = vrot.lane.b32.xlu0 %v194, 72
    %v1028 = vpop.permute.xlu0 %1027
    %1029 = vrot.lane.b32.xlu0 %v199, 72
    %v1030 = vpop.permute.xlu0 %1029
    %1031 = vrot.lane.b32.xlu0 %v204, 72
    %v1032 = vpop.permute.xlu0 %1031
    %1033 = vrot.lane.b32.xlu0 %v209, 72
    %v1034 = vpop.permute.xlu0 %1033
    %v1035 = vsel %vm224, %v1020, 0
    %v1037 = vsel %vm224, %v1022, 0
    %v1039 = vsel %vm224, %v1024, 0
    %v1041 = vsel %vm224, %v1026, 0
    %v1043 = vsel %vm224, %v1028, 0
    %v1045 = vsel %vm224, %v1030, 0
    %v1047 = vsel %vm224, %v1032, 0
    %v1049 = vsel %vm224, %v1034, 0
    %1051 = vmatprep.subr.mxu0 0.0
    %1052 = vmatpush1.xpose.msra.mxu0 0.0
    %1053 = vmatprep.subr.mxu0 0.0
    %1054 = vmatpush1.xpose.msra.mxu0 0.0
    %1055 = vmatprep.subr.mxu0 0.0
    %1056 = vmatpush1.xpose.msra.mxu0 0.0
    %1057 = vmatprep.subr.mxu0 0.0
    %1058 = vmatpush1.xpose.msra.mxu0 0.0
    %1059 = vmatprep.subr.mxu0 0.0
    %1060 = vmatpush1.xpose.msra.mxu0 0.0
    %1061 = vmatprep.subr.mxu0 0.0
    %1062 = vmatpush1.xpose.msra.mxu0 0.0
    %1063 = vmatprep.subr.mxu0 0.0
    %1064 = vmatpush1.xpose.msra.mxu0 0.0
    %1065 = vmatprep.subr.mxu0 0.0
    %1066 = vmatpush1.xpose.msra.mxu0 0.0
    %1067 = vmatprep.subr.mxu0 0.0
    %1068 = vmatpush1.xpose.msra.mxu0 0.0
    %1069 = vmatprep.subr.mxu0 0.0
    %1070 = vmatpush1.xpose.msra.mxu0 0.0
    %1071 = vmatprep.subr.mxu0 0.0
    %1072 = vmatpush1.xpose.msra.mxu0 0.0
    %1073 = vmatprep.subr.mxu0 0.0
    %1074 = vmatpush1.xpose.msra.mxu0 0.0
    %1075 = vmatprep.subr.mxu0 0.0
    %1076 = vmatpush1.xpose.msra.mxu0 %v1049
    %1077 = vmatprep.subr.mxu0 0.0
    %1078 = vmatpush1.xpose.msra.mxu0 %v1047
    %1079 = vmatprep.subr.mxu0 0.0
    %1080 = vmatpush1.xpose.msra.mxu0 %v1045
    %1081 = vmatprep.subr.mxu0 0.0
    %1082 = vmatpush1.xpose.msra.mxu0 %v1043
    %1083 = vmatprep.subr.mxu0 0.0
    %1084 = vmatpush2.xpose.msra.mxu0 0.0
    %1085 = vmatprep.subr.mxu0 0.0
    %1086 = vmatpush2.xpose.msra.mxu0 0.0
    %1087 = vmatprep.subr.mxu0 0.0
    %1088 = vmatpush2.xpose.msra.mxu0 0.0
    %1089 = vmatprep.subr.mxu0 0.0
    %1090 = vmatpush2.xpose.msra.mxu0 0.0
    %1091 = vmatprep.subr.mxu0 0.0
    %1092 = vmatpush2.xpose.msra.mxu0 0.0
    %1093 = vmatprep.subr.mxu0 0.0
    %1094 = vmatpush2.xpose.msra.mxu0 0.0
    %1095 = vmatprep.subr.mxu0 0.0
    %1096 = vmatpush2.xpose.msra.mxu0 0.0
    %1097 = vmatprep.subr.mxu0 0.0
    %1098 = vmatpush2.xpose.msra.mxu0 0.0
    %1099 = vmatprep.subr.mxu0 0.0
    %1100 = vmatpush2.xpose.msra.mxu0 0.0
    %1101 = vmatprep.subr.mxu0 0.0
    %1102 = vmatpush2.xpose.msra.mxu0 0.0
    %1103 = vmatprep.subr.mxu0 0.0
    %1104 = vmatpush2.xpose.msra.mxu0 0.0
    %1105 = vmatprep.subr.mxu0 0.0
    %1106 = vmatpush2.xpose.msra.mxu0 0.0
    %1107 = vmatprep.subr.mxu0 0.0
    %1108 = vmatpush2.xpose.msra.mxu0 0.0
    %1109 = vmatprep.subr.mxu0 0.0
    %1110 = vmatpush2.xpose.msra.mxu0 0.0
    %1111 = vmatprep.subr.mxu0 0.0
    %1112 = vmatpush2.xpose.msra.mxu0 0.0
    %1113 = vmatprep.subr.mxu0 0.0
    %1114 = vmatpush2.xpose.msra.mxu0 0.0
    %1115 = vmatprep.mubr.f32.mxu0 0.0
    %1116 = vmatmul.mubr.f32.gmra.mxu0 %v1035
    %v1117 = vpop.f32.mrf.mxu0
    %v1118 = vadd.f32 %v33, %v1117
    %v1119 = vpop.f32.mrf.mxu0
    %1120 = vmatprep.mubr.f32.mxu0 0.0
    %1121 = vmatmul.mubr.f32.gmra.mxu0 %v1037
    %v1122 = vpop.f32.mrf.mxu0
    %v1123 = vadd.f32 %v34, %v1122
    %v1124 = vpop.f32.mrf.mxu0
    %1125 = vmatprep.mubr.f32.mxu0 0.0
    %1126 = vmatmul.mubr.f32.gmra.mxu0 %v1039
    %v1127 = vpop.f32.mrf.mxu0
    %v1128 = vadd.f32 %v35, %v1127
    %v1129 = vpop.f32.mrf.mxu0
    %1130 = vmatprep.mubr.f32.mxu0 0.0
    %1131 = vmatmul.mubr.f32.gmra.mxu0 %v1041
    %v1132 = vpop.f32.mrf.mxu0
    %v1133 = vadd.f32 %v36, %v1132
    %v1134 = vpop.f32.mrf.mxu0
    %1135 = vdwg.mxu0
    %v1136 = vsel %vm41, %v1118, -inf
    %1137 = vmax.xlane.f32.xlu0 %v1136
    %v1138 = vpop.xlane.xlu0 %1137
    %v1139 = vsel %vm41, %v1123, -inf
    %1140 = vmax.xlane.f32.xlu0 %v1139
    %v1141 = vpop.xlane.xlu0 %1140
    %v1142 = vsel %vm41, %v1128, -inf
    %1143 = vmax.xlane.f32.xlu0 %v1142
    %v1144 = vpop.xlane.xlu0 %1143
    %v1145 = vsel %vm41, %v1133, -inf
    %1146 = vmax.xlane.f32.xlu0 %v1145
    %v1147 = vpop.xlane.xlu0 %1146
    %v1148 = vsub.f32 %v1118, %v1138
    %v1149 = vsub.f32 %v1123, %v1141
    %v1150 = vsub.f32 %v1128, %v1144
    %v1151 = vsub.f32 %v1133, %v1147
    %v1152 = vmul.f32 %v1148, 1.442695
    %v1153 = vpow.pop %v1152
    %v1154 = vmul.f32 %v1149, 1.442695
    %v1155 = vpow.pop %v1154
    %v1156 = vmul.f32 %v1150, 1.442695
    %v1157 = vpow.pop %v1156
    %v1158 = vmul.f32 %v1151, 1.442695
    %v1159 = vpow.pop %v1158
    %v1160 = vsel %vm41, %v1153, 0.0
    %1161 = vadd.xlane.f32.xlu0 %v1160
    %v1162 = vpop.xlane.xlu0 %1161
    %v1163 = vsel %vm41, %v1155, 0.0
    %1164 = vadd.xlane.f32.xlu0 %v1163
    %v1165 = vpop.xlane.xlu0 %1164
    %v1166 = vsel %vm41, %v1157, 0.0
    %1167 = vadd.xlane.f32.xlu0 %v1166
    %v1168 = vpop.xlane.xlu0 %1167
    %v1169 = vsel %vm41, %v1159, 0.0
    %1170 = vadd.xlane.f32.xlu0 %v1169
    %v1171 = vpop.xlane.xlu0 %1170
    %v1172 = vrcp.pop %v1162
    %v1173 = vrcp.pop %v1165
    %v1174 = vrcp.pop %v1168
    %v1175 = vrcp.pop %v1171
    %v1176 = vmul.f32 %v1153, %v1172
    %v1177 = vmul.f32 %v1155, %v1173
    %v1178 = vmul.f32 %v1157, %v1174
    %v1179 = vmul.f32 %v1159, %v1175
    %1180 = vrot.lane.b32.xlu0 %v194, 40
    %v1181 = vpop.permute.xlu0 %1180
    %1182 = vrot.lane.b32.xlu0 %v199, 40
    %v1183 = vpop.permute.xlu0 %1182
    %1184 = vrot.lane.b32.xlu0 %v204, 40
    %v1185 = vpop.permute.xlu0 %1184
    %1186 = vrot.lane.b32.xlu0 %v209, 40
    %v1187 = vpop.permute.xlu0 %1186
    %v1193 = vsel %vm41, %v1176, 0
    %v1196 = vsel %vm41, %v1177, 0
    %v1199 = vsel %vm41, %v1178, 0
    %v1202 = vsel %vm41, %v1179, 0
    %1204 = vmatprep.subr.mxu0 0.0
    %1205 = vmatpush1.msra.mxu0 0.0
    %1206 = vmatprep.subr.mxu0 0.0
    %1207 = vmatpush1.msra.mxu0 0.0
    %1208 = vmatprep.subr.mxu0 0.0
    %1209 = vmatpush1.msra.mxu0 0.0
    %1210 = vmatprep.subr.mxu0 0.0
    %1211 = vmatpush1.msra.mxu0 0.0
    %1212 = vmatprep.subr.mxu0 0.0
    %1213 = vmatpush1.msra.mxu0 0.0
    %1214 = vmatprep.subr.mxu0 0.0
    %1215 = vmatpush1.msra.mxu0 0.0
    %1216 = vmatprep.subr.mxu0 0.0
    %1217 = vmatpush1.msra.mxu0 0.0
    %1218 = vmatprep.subr.mxu0 0.0
    %1219 = vmatpush1.msra.mxu0 0.0
    %1220 = vmatprep.subr.mxu0 0.0
    %1221 = vmatpush1.msra.mxu0 0.0
    %1222 = vmatprep.subr.mxu0 0.0
    %1223 = vmatpush1.msra.mxu0 0.0
    %1224 = vmatprep.subr.mxu0 0.0
    %1225 = vmatpush1.msra.mxu0 0.0
    %1226 = vmatprep.subr.mxu0 0.0
    %1227 = vmatpush1.msra.mxu0 0.0
    %1228 = vmatprep.subr.mxu0 0.0
    %1229 = vmatpush1.msra.mxu0 %v1187
    %1230 = vmatprep.subr.mxu0 0.0
    %1231 = vmatpush1.msra.mxu0 %v1185
    %1232 = vmatprep.subr.mxu0 0.0
    %1233 = vmatpush1.msra.mxu0 %v1183
    %1234 = vmatprep.subr.mxu0 0.0
    %1235 = vmatpush1.msra.mxu0 %v1181
    %1236 = vmatprep.subr.mxu0 0.0
    %1237 = vmatpush2.msra.mxu0 0.0
    %1238 = vmatprep.subr.mxu0 0.0
    %1239 = vmatpush2.msra.mxu0 0.0
    %1240 = vmatprep.subr.mxu0 0.0
    %1241 = vmatpush2.msra.mxu0 0.0
    %1242 = vmatprep.subr.mxu0 0.0
    %1243 = vmatpush2.msra.mxu0 0.0
    %1244 = vmatprep.subr.mxu0 0.0
    %1245 = vmatpush2.msra.mxu0 0.0
    %1246 = vmatprep.subr.mxu0 0.0
    %1247 = vmatpush2.msra.mxu0 0.0
    %1248 = vmatprep.subr.mxu0 0.0
    %1249 = vmatpush2.msra.mxu0 0.0
    %1250 = vmatprep.subr.mxu0 0.0
    %1251 = vmatpush2.msra.mxu0 0.0
    %1252 = vmatprep.subr.mxu0 0.0
    %1253 = vmatpush2.msra.mxu0 0.0
    %1254 = vmatprep.subr.mxu0 0.0
    %1255 = vmatpush2.msra.mxu0 0.0
    %1256 = vmatprep.subr.mxu0 0.0
    %1257 = vmatpush2.msra.mxu0 0.0
    %1258 = vmatprep.subr.mxu0 0.0
    %1259 = vmatpush2.msra.mxu0 0.0
    %1260 = vmatprep.subr.mxu0 0.0
    %1261 = vmatpush2.msra.mxu0 0.0
    %1262 = vmatprep.subr.mxu0 0.0
    %1263 = vmatpush2.msra.mxu0 0.0
    %1264 = vmatprep.subr.mxu0 0.0
    %1265 = vmatpush2.msra.mxu0 0.0
    %1266 = vmatprep.subr.mxu0 0.0
    %1267 = vmatpush2.msra.mxu0 0.0
    %1268 = vmatprep.mubr.f32.mxu0 0.0
    %1269 = vmatmul.mubr.f32.gmra.mxu0 %v1193
    %v1270 = vpop.f32.mrf.mxu0
    %v1271 = vadd.f32 0.0, %v1270
    %v1272 = vpop.f32.mrf.mxu0
    %1273 = vmatprep.mubr.f32.mxu0 0.0
    %1274 = vmatmul.mubr.f32.gmra.mxu0 %v1196
    %v1275 = vpop.f32.mrf.mxu0
    %v1276 = vadd.f32 0.0, %v1275
    %v1277 = vpop.f32.mrf.mxu0
    %1278 = vmatprep.mubr.f32.mxu0 0.0
    %1279 = vmatmul.mubr.f32.gmra.mxu0 %v1199
    %v1280 = vpop.f32.mrf.mxu0
    %v1281 = vadd.f32 0.0, %v1280
    %v1282 = vpop.f32.mrf.mxu0
    %1283 = vmatprep.mubr.f32.mxu0 0.0
    %1284 = vmatmul.mubr.f32.gmra.mxu0 %v1202
    %v1285 = vpop.f32.mrf.mxu0
    %v1286 = vadd.f32 0.0, %v1285
    %v1287 = vpop.f32.mrf.mxu0
    %1288 = vdwg.mxu0
    %1293 = vrot.lane.b32.xlu0 %v731, 8
    %v1294 = vpop.permute.xlu0 %1293
    %1295 = vrot.lane.b32.xlu0 %v736, 8
    %v1296 = vpop.permute.xlu0 %1295
    %1297 = vrot.lane.b32.xlu0 %v741, 8
    %v1298 = vpop.permute.xlu0 %1297
    %1299 = vrot.lane.b32.xlu0 %v746, 8
    %v1300 = vpop.permute.xlu0 %1299
    %1309 = vrot.lane.b32.xlu0 %v1001, 16
    %v1310 = vpop.permute.xlu0 %1309
    %1311 = vrot.lane.b32.xlu0 %v1006, 16
    %v1312 = vpop.permute.xlu0 %1311
    %1313 = vrot.lane.b32.xlu0 %v1011, 16
    %v1314 = vpop.permute.xlu0 %1313
    %1315 = vrot.lane.b32.xlu0 %v1016, 16
    %v1316 = vpop.permute.xlu0 %1315
    %1325 = vrot.lane.b32.xlu0 %v1271, 24
    %v1326 = vpop.permute.xlu0 %1325
    %1327 = vrot.lane.b32.xlu0 %v1276, 24
    %v1328 = vpop.permute.xlu0 %1327
    %1329 = vrot.lane.b32.xlu0 %v1281, 24
    %v1330 = vpop.permute.xlu0 %1329
    %1331 = vrot.lane.b32.xlu0 %v1286, 24
    %v1332 = vpop.permute.xlu0 %1331
    %v1337 = vsel %vm224, %v461, %v1294
    %v1338 = vsel %vm224, %v466, %v1296
    %v1339 = vsel %vm224, %v471, %v1298
    %v1340 = vsel %vm224, %v476, %v1300
    %vm1341 = vcmask 130048
    %v1342 = vsel %vm1341, %v1337, %v1310
    %v1343 = vsel %vm1341, %v1338, %v1312
    %v1344 = vsel %vm1341, %v1339, %v1314
    %v1345 = vsel %vm1341, %v1340, %v1316
    %vm1346 = vcmask 195584
    %v1347 = vsel %vm1346, %v1342, %v1326
    %v1348 = vsel %vm1346, %v1343, %v1328
    %v1349 = vsel %vm1346, %v1344, %v1330
    %v1350 = vsel %vm1346, %v1345, %v1332
    %v1351 = vlaneseq
    %v1352 = vshrl.u32 %v1351, 7
    %v1353 = vsub.s32 0, %v1352
    %v1354 = vrot.slane %v28, %v1353
    %1359 = vrot.lane.b32.xlu0 %v37, 32
    %v1360 = vpop.permute.xlu0 %1359
    %1361 = vrot.lane.b32.xlu0 %v38, 32
    %v1362 = vpop.permute.xlu0 %1361
    %1363 = vrot.lane.b32.xlu0 %v39, 32
    %v1364 = vpop.permute.xlu0 %1363
    %1365 = vrot.lane.b32.xlu0 %v40, 32
    %v1366 = vpop.permute.xlu0 %1365
    %v1372 = vsel %vm41, %v1347, 0
    %v1375 = vsel %vm41, %v1348, 0
    %v1378 = vsel %vm41, %v1349, 0
    %v1381 = vsel %vm41, %v1350, 0
    %1383 = vmatprep.subr.mxu0 0.0
    %1384 = vmatpush1.msra.mxu0 0.0
    %1385 = vmatprep.subr.mxu0 0.0
    %1386 = vmatpush1.msra.mxu0 0.0
    %1387 = vmatprep.subr.mxu0 0.0
    %1388 = vmatpush1.msra.mxu0 0.0
    %1389 = vmatprep.subr.mxu0 0.0
    %1390 = vmatpush1.msra.mxu0 0.0
    %1391 = vmatprep.subr.mxu0 0.0
    %1392 = vmatpush1.msra.mxu0 0.0
    %1393 = vmatprep.subr.mxu0 0.0
    %1394 = vmatpush1.msra.mxu0 0.0
    %1395 = vmatprep.subr.mxu0 0.0
    %1396 = vmatpush1.msra.mxu0 0.0
    %1397 = vmatprep.subr.mxu0 0.0
    %1398 = vmatpush1.msra.mxu0 0.0
    %1399 = vmatprep.subr.mxu0 0.0
    %1400 = vmatpush1.msra.mxu0 0.0
    %1401 = vmatprep.subr.mxu0 0.0
    %1402 = vmatpush1.msra.mxu0 0.0
    %1403 = vmatprep.subr.mxu0 0.0
    %1404 = vmatpush1.msra.mxu0 0.0
    %1405 = vmatprep.subr.mxu0 0.0
    %1406 = vmatpush1.msra.mxu0 0.0
    %1407 = vmatprep.subr.mxu0 0.0
    %1408 = vmatpush1.msra.mxu0 %v1366
    %1409 = vmatprep.subr.mxu0 0.0
    %1410 = vmatpush1.msra.mxu0 %v1364
    %1411 = vmatprep.subr.mxu0 0.0
    %1412 = vmatpush1.msra.mxu0 %v1362
    %1413 = vmatprep.subr.mxu0 0.0
    %1414 = vmatpush1.msra.mxu0 %v1360
    %1415 = vmatprep.subr.mxu0 0.0
    %1416 = vmatpush2.msra.mxu0 0.0
    %1417 = vmatprep.subr.mxu0 0.0
    %1418 = vmatpush2.msra.mxu0 0.0
    %1419 = vmatprep.subr.mxu0 0.0
    %1420 = vmatpush2.msra.mxu0 0.0
    %1421 = vmatprep.subr.mxu0 0.0
    %1422 = vmatpush2.msra.mxu0 0.0
    %1423 = vmatprep.subr.mxu0 0.0
    %1424 = vmatpush2.msra.mxu0 0.0
    %1425 = vmatprep.subr.mxu0 0.0
    %1426 = vmatpush2.msra.mxu0 0.0
    %1427 = vmatprep.subr.mxu0 0.0
    %1428 = vmatpush2.msra.mxu0 0.0
    %1429 = vmatprep.subr.mxu0 0.0
    %1430 = vmatpush2.msra.mxu0 0.0
    %1431 = vmatprep.subr.mxu0 0.0
    %1432 = vmatpush2.msra.mxu0 0.0
    %1433 = vmatprep.subr.mxu0 0.0
    %1434 = vmatpush2.msra.mxu0 0.0
    %1435 = vmatprep.subr.mxu0 0.0
    %1436 = vmatpush2.msra.mxu0 0.0
    %1437 = vmatprep.subr.mxu0 0.0
    %1438 = vmatpush2.msra.mxu0 0.0
    %1439 = vmatprep.subr.mxu0 0.0
    %1440 = vmatpush2.msra.mxu0 0.0
    %1441 = vmatprep.subr.mxu0 0.0
    %1442 = vmatpush2.msra.mxu0 0.0
    %1443 = vmatprep.subr.mxu0 0.0
    %1444 = vmatpush2.msra.mxu0 0.0
    %1445 = vmatprep.subr.mxu0 0.0
    %1446 = vmatpush2.msra.mxu0 0.0
    %1447 = vmatprep.mubr.f32.mxu0 0.0
    %1448 = vmatmul.mubr.f32.gmra.mxu0 %v1372
    %v1449 = vpop.f32.mrf.mxu0
    %v1450 = vadd.f32 %v1354, %v1449
    %v1451 = vpop.f32.mrf.mxu0
    %1452 = vmatprep.mubr.f32.mxu0 0.0
    %1453 = vmatmul.mubr.f32.gmra.mxu0 %v1375
    %v1454 = vpop.f32.mrf.mxu0
    %v1455 = vadd.f32 %v1354, %v1454
    %v1456 = vpop.f32.mrf.mxu0
    %1457 = vmatprep.mubr.f32.mxu0 0.0
    %1458 = vmatmul.mubr.f32.gmra.mxu0 %v1378
    %v1459 = vpop.f32.mrf.mxu0
    %v1460 = vadd.f32 %v1354, %v1459
    %v1461 = vpop.f32.mrf.mxu0
    %1462 = vmatprep.mubr.f32.mxu0 0.0
    %1463 = vmatmul.mubr.f32.gmra.mxu0 %v1381
    %v1464 = vpop.f32.mrf.mxu0
    %v1465 = vadd.f32 %v1354, %v1464
    %v1466 = vpop.f32.mrf.mxu0
    %1467 = vdwg.mxu0
    %v1468 = vadd.f32 %v21, %v1450
    %v1469 = vadd.f32 %v22, %v1455
    %v1470 = vadd.f32 %v23, %v1460
    %v1471 = vadd.f32 %v24, %v1465
    %v1472 = vsel %vm41, %v1468, 0.0
    %1473 = vadd.xlane.f32.xlu0 %v1472
    %v1474 = vpop.xlane.xlu0 %1473
    %v1475 = vsel %vm41, %v1469, 0.0
    %1476 = vadd.xlane.f32.xlu0 %v1475
    %v1477 = vpop.xlane.xlu0 %1476
    %v1478 = vsel %vm41, %v1470, 0.0
    %1479 = vadd.xlane.f32.xlu0 %v1478
    %v1480 = vpop.xlane.xlu0 %1479
    %v1481 = vsel %vm41, %v1471, 0.0
    %1482 = vadd.xlane.f32.xlu0 %v1481
    %v1483 = vpop.xlane.xlu0 %1482
    %v1484 = vmul.f32 %v1474, %v54
    %v1485 = vmul.f32 %v1477, %v54
    %v1486 = vmul.f32 %v1480, %v54
    %v1487 = vmul.f32 %v1483, %v54
    %v1488 = vsub.f32 %v1468, %v1484
    %v1489 = vsub.f32 %v1469, %v1485
    %v1490 = vsub.f32 %v1470, %v1486
    %v1491 = vsub.f32 %v1471, %v1487
    %v1492 = vmul.f32 %v1488, %v1488
    %v1493 = vmul.f32 %v1489, %v1489
    %v1494 = vmul.f32 %v1490, %v1490
    %v1495 = vmul.f32 %v1491, %v1491
    %v1496 = vsel %vm41, %v1492, 0.0
    %1497 = vadd.xlane.f32.xlu0 %v1496
    %v1498 = vpop.xlane.xlu0 %1497
    %v1499 = vsel %vm41, %v1493, 0.0
    %1500 = vadd.xlane.f32.xlu0 %v1499
    %v1501 = vpop.xlane.xlu0 %1500
    %v1502 = vsel %vm41, %v1494, 0.0
    %1503 = vadd.xlane.f32.xlu0 %v1502
    %v1504 = vpop.xlane.xlu0 %1503
    %v1505 = vsel %vm41, %v1495, 0.0
    %1506 = vadd.xlane.f32.xlu0 %v1505
    %v1507 = vpop.xlane.xlu0 %1506
    %v1508 = vmul.f32 %v1498, %v54
    %v1509 = vmul.f32 %v1501, %v54
    %v1510 = vmul.f32 %v1504, %v54
    %v1511 = vmul.f32 %v1507, %v54
    %v1512 = vadd.f32 %v1508, 1e-05
    %v1513 = vadd.f32 %v1509, 1e-05
    %v1514 = vadd.f32 %v1510, 1e-05
    %v1515 = vadd.f32 %v1511, 1e-05
    %v1516 = vrsqrt.pop %v1512
    %v1517 = vrsqrt.pop %v1513
    %v1518 = vrsqrt.pop %v1514
    %v1519 = vrsqrt.pop %v1515
    %v1520 = vmul.f32 %v1488, %v1516
    %v1521 = vmul.f32 %v1489, %v1517
    %v1522 = vmul.f32 %v1490, %v1518
    %v1523 = vmul.f32 %v1491, %v1519
    %v1524 = vlaneseq
    %v1525 = vshrl.u32 %v1524, 7
    %v1526 = vsub.s32 0, %v1525
    %v1527 = vrot.slane %v29, %v1526
    %v1528 = vmul.f32 %v1520, %v1527
    %v1529 = vmul.f32 %v1521, %v1527
    %v1530 = vmul.f32 %v1522, %v1527
    %v1531 = vmul.f32 %v1523, %v1527
    %v1532 = vlaneseq
    %v1533 = vshrl.u32 %v1532, 7
    %v1534 = vsub.s32 0, %v1533
    %v1535 = vrot.slane %v30, %v1534
    %v1536 = vadd.f32 %v1528, %v1535
    %v1537 = vadd.f32 %v1529, %v1535
    %v1538 = vadd.f32 %v1530, %v1535
    %v1539 = vadd.f32 %v1531, %v1535
    %v1540 = vld [vmem:[%s2] sm:$0xff]
    %v1541 = vld [vmem:[%s2 + $0x8] sm:$0xff]
    %v1542 = vld [vmem:[%s2 + $0x10] sm:$0xff]
    %v1543 = vld [vmem:[%s2 + $0x18] sm:$0xff]
    %v1544 = vlaneseq
    %v1545 = vshrl.u32 %v1544, 7
    %v1546 = vsub.s32 0, %v1545
    %v1547 = vrot.slane %v31, %v1546
    %v1549 = vsel %vm41, %v1536, 0
    %v1552 = vsel %vm41, %v1537, 0
    %v1555 = vsel %vm41, %v1538, 0
    %v1558 = vsel %vm41, %v1539, 0
    %1560 = vmatprep.subr.mxu0 0.0
    %1561 = vmatpush1.msra.mxu0 0.0
    %1562 = vmatprep.subr.mxu0 0.0
    %1563 = vmatpush1.msra.mxu0 0.0
    %1564 = vmatprep.subr.mxu0 0.0
    %1565 = vmatpush1.msra.mxu0 0.0
    %1566 = vmatprep.subr.mxu0 0.0
    %1567 = vmatpush1.msra.mxu0 0.0
    %1568 = vmatprep.subr.mxu0 0.0
    %1569 = vmatpush1.msra.mxu0 0.0
    %1570 = vmatprep.subr.mxu0 0.0
    %1571 = vmatpush1.msra.mxu0 0.0
    %1572 = vmatprep.subr.mxu0 0.0
    %1573 = vmatpush1.msra.mxu0 0.0
    %1574 = vmatprep.subr.mxu0 0.0
    %1575 = vmatpush1.msra.mxu0 0.0
    %1576 = vmatprep.subr.mxu0 0.0
    %1577 = vmatpush1.msra.mxu0 0.0
    %1578 = vmatprep.subr.mxu0 0.0
    %1579 = vmatpush1.msra.mxu0 0.0
    %1580 = vmatprep.subr.mxu0 0.0
    %1581 = vmatpush1.msra.mxu0 0.0
    %1582 = vmatprep.subr.mxu0 0.0
    %1583 = vmatpush1.msra.mxu0 0.0
    %1584 = vmatprep.subr.mxu0 0.0
    %1585 = vmatpush1.msra.mxu0 %v1543
    %1586 = vmatprep.subr.mxu0 0.0
    %1587 = vmatpush1.msra.mxu0 %v1542
    %1588 = vmatprep.subr.mxu0 0.0
    %1589 = vmatpush1.msra.mxu0 %v1541
    %1590 = vmatprep.subr.mxu0 0.0
    %1591 = vmatpush1.msra.mxu0 %v1540
    %1592 = vmatprep.subr.mxu0 0.0
    %1593 = vmatpush2.msra.mxu0 0.0
    %1594 = vmatprep.subr.mxu0 0.0
    %1595 = vmatpush2.msra.mxu0 0.0
    %1596 = vmatprep.subr.mxu0 0.0
    %1597 = vmatpush2.msra.mxu0 0.0
    %1598 = vmatprep.subr.mxu0 0.0
    %1599 = vmatpush2.msra.mxu0 0.0
    %1600 = vmatprep.subr.mxu0 0.0
    %1601 = vmatpush2.msra.mxu0 0.0
    %1602 = vmatprep.subr.mxu0 0.0
    %1603 = vmatpush2.msra.mxu0 0.0
    %1604 = vmatprep.subr.mxu0 0.0
    %1605 = vmatpush2.msra.mxu0 0.0
    %1606 = vmatprep.subr.mxu0 0.0
    %1607 = vmatpush2.msra.mxu0 0.0
    %1608 = vmatprep.subr.mxu0 0.0
    %1609 = vmatpush2.msra.mxu0 0.0
    %1610 = vmatprep.subr.mxu0 0.0
    %1611 = vmatpush2.msra.mxu0 0.0
    %1612 = vmatprep.subr.mxu0 0.0
    %1613 = vmatpush2.msra.mxu0 0.0
    %1614 = vmatprep.subr.mxu0 0.0
    %1615 = vmatpush2.msra.mxu0 0.0
    %1616 = vmatprep.subr.mxu0 0.0
    %1617 = vmatpush2.msra.mxu0 0.0
    %1618 = vmatprep.subr.mxu0 0.0
    %1619 = vmatpush2.msra.mxu0 0.0
    %1620 = vmatprep.subr.mxu0 0.0
    %1621 = vmatpush2.msra.mxu0 0.0
    %1622 = vmatprep.subr.mxu0 0.0
    %1623 = vmatpush2.msra.mxu0 0.0
    %1624 = vmatprep.mubr.f32.mxu0 0.0
    %1625 = vmatmul.mubr.f32.gmra.mxu0 %v1549
    %v1626 = vpop.f32.mrf.mxu0
    %v1627 = vadd.f32 %v1547, %v1626
    %v1628 = vpop.f32.mrf.mxu0
    %1629 = vmatprep.mubr.f32.mxu0 0.0
    %1630 = vmatmul.mubr.f32.gmra.mxu0 %v1552
    %v1631 = vpop.f32.mrf.mxu0
    %v1632 = vadd.f32 %v1547, %v1631
    %v1633 = vpop.f32.mrf.mxu0
    %1634 = vmatprep.mubr.f32.mxu0 0.0
    %1635 = vmatmul.mubr.f32.gmra.mxu0 %v1555
    %v1636 = vpop.f32.mrf.mxu0
    %v1637 = vadd.f32 %v1547, %v1636
    %v1638 = vpop.f32.mrf.mxu0
    %1639 = vmatprep.mubr.f32.mxu0 0.0
    %1640 = vmatmul.mubr.f32.gmra.mxu0 %v1558
    %v1641 = vpop.f32.mrf.mxu0
    %v1642 = vadd.f32 %v1547, %v1641
    %v1643 = vpop.f32.mrf.mxu0
    %1644 = vdwg.mxu0
    %v1645 = vxor.u32 %v1627, 2147483648
    %v1646 = vxor.u32 %v1632, 2147483648
    %v1647 = vxor.u32 %v1637, 2147483648
    %v1648 = vxor.u32 %v1642, 2147483648
    %v1649 = vmul.f32 %v1645, 1.442695
    %v1650 = vpow.pop %v1649
    %v1651 = vmul.f32 %v1646, 1.442695
    %v1652 = vpow.pop %v1651
    %v1653 = vmul.f32 %v1647, 1.442695
    %v1654 = vpow.pop %v1653
    %v1655 = vmul.f32 %v1648, 1.442695
    %v1656 = vpow.pop %v1655
    %v1657 = vadd.f32 %v1650, 1.0
    %v1658 = vadd.f32 %v1652, 1.0
    %v1659 = vadd.f32 %v1654, 1.0
    %v1660 = vadd.f32 %v1656, 1.0
    %v1661 = vrcp.pop %v1657
    %v1662 = vmul.f32 1.0, %v1661
    %v1663 = vrcp.pop %v1658
    %v1664 = vmul.f32 1.0, %v1663
    %v1665 = vrcp.pop %v1659
    %v1666 = vmul.f32 1.0, %v1665
    %v1667 = vrcp.pop %v1660
    %v1668 = vmul.f32 1.0, %v1667
    %v1669 = vmul.f32 %v1627, %v1662
    %v1670 = vmul.f32 %v1632, %v1664
    %v1671 = vmul.f32 %v1637, %v1666
    %v1672 = vmul.f32 %v1642, %v1668
    %v1673 = vld [vmem:[%s3] sm:$0xff]
    %v1674 = vld [vmem:[%s3 + $0x8] sm:$0xff]
    %v1675 = vld [vmem:[%s3 + $0x10] sm:$0xff]
    %v1676 = vld [vmem:[%s3 + $0x18] sm:$0xff]
    %v1677 = vld [vmem:[%s3 + $0x20] sm:$0xff]
    %v1678 = vld [vmem:[%s3 + $0x28] sm:$0xff]
    %v1679 = vld [vmem:[%s3 + $0x30] sm:$0xff]
    %v1680 = vld [vmem:[%s3 + $0x38] sm:$0xff]
    %v1681 = vlaneseq
    %v1682 = vshrl.u32 %v1681, 7
    %v1683 = vsub.s32 0, %v1682
    %v1684 = vrot.slane %v32, %v1683
    %vm1685 = vcmask 523264
    %v1687 = vsel %vm1685, %v1669, 0
    %v1690 = vsel %vm1685, %v1670, 0
    %v1693 = vsel %vm1685, %v1671, 0
    %v1696 = vsel %vm1685, %v1672, 0
    %1698 = vmatprep.subr.mxu0 0.0
    %1699 = vmatpush1.msra.mxu0 0.0
    %1700 = vmatprep.subr.mxu0 0.0
    %1701 = vmatpush1.msra.mxu0 0.0
    %1702 = vmatprep.subr.mxu0 0.0
    %1703 = vmatpush1.msra.mxu0 0.0
    %1704 = vmatprep.subr.mxu0 0.0
    %1705 = vmatpush1.msra.mxu0 0.0
    %1706 = vmatprep.subr.mxu0 0.0
    %1707 = vmatpush1.msra.mxu0 0.0
    %1708 = vmatprep.subr.mxu0 0.0
    %1709 = vmatpush1.msra.mxu0 0.0
    %1710 = vmatprep.subr.mxu0 0.0
    %1711 = vmatpush1.msra.mxu0 0.0
    %1712 = vmatprep.subr.mxu0 0.0
    %1713 = vmatpush1.msra.mxu0 0.0
    %1714 = vmatprep.subr.mxu0 0.0
    %1715 = vmatpush1.msra.mxu0 %v1680
    %1716 = vmatprep.subr.mxu0 0.0
    %1717 = vmatpush1.msra.mxu0 %v1679
    %1718 = vmatprep.subr.mxu0 0.0
    %1719 = vmatpush1.msra.mxu0 %v1678
    %1720 = vmatprep.subr.mxu0 0.0
    %1721 = vmatpush1.msra.mxu0 %v1677
    %1722 = vmatprep.subr.mxu0 0.0
    %1723 = vmatpush1.msra.mxu0 %v1676
    %1724 = vmatprep.subr.mxu0 0.0
    %1725 = vmatpush1.msra.mxu0 %v1675
    %1726 = vmatprep.subr.mxu0 0.0
    %1727 = vmatpush1.msra.mxu0 %v1674
    %1728 = vmatprep.subr.mxu0 0.0
    %1729 = vmatpush1.msra.mxu0 %v1673
    %1730 = vmatprep.subr.mxu0 0.0
    %1731 = vmatpush2.msra.mxu0 0.0
    %1732 = vmatprep.subr.mxu0 0.0
    %1733 = vmatpush2.msra.mxu0 0.0
    %1734 = vmatprep.subr.mxu0 0.0
    %1735 = vmatpush2.msra.mxu0 0.0
    %1736 = vmatprep.subr.mxu0 0.0
    %1737 = vmatpush2.msra.mxu0 0.0
    %1738 = vmatprep.subr.mxu0 0.0
    %1739 = vmatpush2.msra.mxu0 0.0
    %1740 = vmatprep.subr.mxu0 0.0
    %1741 = vmatpush2.msra.mxu0 0.0
    %1742 = vmatprep.subr.mxu0 0.0
    %1743 = vmatpush2.msra.mxu0 0.0
    %1744 = vmatprep.subr.mxu0 0.0
    %1745 = vmatpush2.msra.mxu0 0.0
    %1746 = vmatprep.subr.mxu0 0.0
    %1747 = vmatpush2.msra.mxu0 0.0
    %1748 = vmatprep.subr.mxu0 0.0
    %1749 = vmatpush2.msra.mxu0 0.0
    %1750 = vmatprep.subr.mxu0 0.0
    %1751 = vmatpush2.msra.mxu0 0.0
    %1752 = vmatprep.subr.mxu0 0.0
    %1753 = vmatpush2.msra.mxu0 0.0
    %1754 = vmatprep.subr.mxu0 0.0
    %1755 = vmatpush2.msra.mxu0 0.0
    %1756 = vmatprep.subr.mxu0 0.0
    %1757 = vmatpush2.msra.mxu0 0.0
    %1758 = vmatprep.subr.mxu0 0.0
    %1759 = vmatpush2.msra.mxu0 0.0
    %1760 = vmatprep.subr.mxu0 0.0
    %1761 = vmatpush2.msra.mxu0 0.0
    %1762 = vmatprep.mubr.f32.mxu0 0.0
    %1763 = vmatmul.mubr.f32.gmra.mxu0 %v1687
    %v1764 = vpop.f32.mrf.mxu0
    %v1765 = vadd.f32 %v1684, %v1764
    %v1766 = vpop.f32.mrf.mxu0
    %1767 = vmatprep.mubr.f32.mxu0 0.0
    %1768 = vmatmul.mubr.f32.gmra.mxu0 %v1690
    %v1769 = vpop.f32.mrf.mxu0
    %v1770 = vadd.f32 %v1684, %v1769
    %v1771 = vpop.f32.mrf.mxu0
    %1772 = vmatprep.mubr.f32.mxu0 0.0
    %1773 = vmatmul.mubr.f32.gmra.mxu0 %v1693
    %v1774 = vpop.f32.mrf.mxu0
    %v1775 = vadd.f32 %v1684, %v1774
    %v1776 = vpop.f32.mrf.mxu0
    %1777 = vmatprep.mubr.f32.mxu0 0.0
    %1778 = vmatmul.mubr.f32.gmra.mxu0 %v1696
    %v1779 = vpop.f32.mrf.mxu0
    %v1780 = vadd.f32 %v1684, %v1779
    %v1781 = vpop.f32.mrf.mxu0
    %1782 = vdwg.mxu0
    %v1783 = vadd.f32 %v1468, %v1765
    %v1784 = vadd.f32 %v1469, %v1770
    %v1785 = vadd.f32 %v1470, %v1775
    %v1786 = vadd.f32 %v1471, %v1780
    %1787 = vst.msk [vmem:[#allocation2] sm:$0xff] %vm41, %v1783
    %1788 = vst.msk [vmem:[#allocation2 + $0x8] sm:$0xff] %vm41, %v1784
    %1789 = vst.msk [vmem:[#allocation2 + $0x10] sm:$0xff] %vm41, %v1785
    %1790 = vst.msk [vmem:[#allocation2 + $0x18] sm:$0xff] %vm41, %v1786
    // Predicated region
    $region22: #{block_forward.1} parent=1 // pred_check
      _
    $region23: #{block_forward.1} parent=1 // pred_check_branch
      %1792 = sbr.rel (0) target = $region25
    $region24: #{block_forward.1} parent=1 // pred_region
      %s1794 = ssub.s32 512, 512
      %1795 = vsyncadd [#allocation3], %s1794
      %s1796 = sshll.u32 [#allocation2], 4
      %s1797 = int_to_ptr.vmem [resolvable:$true] %s1796
      %1802 = dma.vmem_to_hbm [thread:$0]  %s1797, 512, %s5, [#allocation3], 128, 128, 8
    $region25: #{block_forward.1} parent=1 // pred_fallthru
      _
    // Predicated region
    $region26: #{block_forward.1} parent=1 // pred_check
      _
    $region27: #{block_forward.1} parent=1 // pred_check_branch
      %1804 = sbr.rel (0) target = $region29
    $region28: #{block_forward.1} parent=1 // pred_region
      %1805 = dma.done [#allocation3], 512
    $region29: #{block_forward.1} parent=1 // pred_fallthru
      _
    %1806 = vsyncpa [#allocation3], 1

</llo_original>
